<compile_context>
chip_gen: v7x
topology: tpu7x:2x2x1
jax: 0.10.0
libtpu: 0.0.40
codegen_flags: <defaults>
</compile_context>

<pallas_src>
import functools

import jax
import jax.numpy as jnp
from jax.experimental import pallas as pl
from jax.experimental.pallas import tpu as pltpu


# ----------------------------- helpers ------------------------------------- #

def _round_up(x, m):
    return ((x + m - 1) // m) * m


def _pad2(a, rows, cols):
    return jnp.pad(a, ((0, rows - a.shape[0]), (0, cols - a.shape[1])))


def _mish(x):
    # mish(x) = x * tanh(softplus(x)); one exp + approx reciprocal:
    #   t = exp(min(x, 20)); tanh(log1p(t)) = u / (u + 2), u = t * (t + 2)
    t = jnp.exp(jnp.minimum(x, 20.0))
    u = t * (t + 2.0)
    tsp = u * pl.reciprocal(u + 2.0, approx=True)
    return jnp.where(x > 20.0, x, x * tsp)


def _layernorm(x, gamma, beta, eps=1e-5):
    mu = jnp.mean(x, axis=-1, keepdims=True)
    var = jnp.mean(jnp.square(x - mu), axis=-1, keepdims=True)
    return (x - mu) * jax.lax.rsqrt(var + eps) * gamma + beta


# ----------------------------- fused kernel -------------------------------- #

def gine_fused_kernel(x0_ref, src_ref, dstT_ref, ef_ref, vec_ref,
                      we_ref, w1_ref, b1_ref, w2_ref,
                      out_ref, x_sc, *, num_layers):
    l = pl.program_id(0)                      # layer index (sequential dependency)

    @pl.when(l == 0)
    def _():
        x_sc[...] = x0_ref[...]               # load initial node features once

    x = x_sc[...]                             # [Np, Dp] f32, carried across layers

    v = vec_ref[...]                          # [8, Dp] packed per-layer row vectors
    eps1 = v[0:1, :]                          # 1 + eps
    be = v[1:2, :]                            # GINE edge-linear bias
    b2 = v[2:3, :]                            # MLP lin2 bias

    # edge messages: m_e = relu(x_src(e) + lin(edge_attr_e))              [Ep, Dp]
    # Padded edge rows give relu(be) != 0, but their dst^T columns are zero, so
    # they contribute nothing to the scatter-add.  Padded node rows never feed
    # real rows (their src columns / dst^T rows are zero); stripped at the end.
    e_lin = jnp.dot(ef_ref[...], we_ref[...],
                    preferred_element_type=jnp.float32) + be
    x_src = jnp.dot(src_ref[...], x.astype(jnp.bfloat16),
                    preferred_element_type=jnp.float32)
    m = jnp.maximum(x_src + e_lin, 0.0)

    # scatter-add to target nodes: dst^T is pre-transposed -> plain contraction
    aggr = jnp.dot(dstT_ref[...], m.astype(jnp.bfloat16),
                   preferred_element_type=jnp.float32)                 # [Np, Dp]

    # GINE combine + MLP (eval-mode BatchNorm folded into w1/b1)
    z = x * eps1 + aggr
    h = jnp.dot(z, w1_ref[...], preferred_element_type=jnp.float32) + b1_ref[...]
    h = _mish(h)
    out = jnp.dot(h, w2_ref[...], preferred_element_type=jnp.float32) + b2

    @pl.when(l < num_layers - 1)
    def _():
        # inter-layer ReLU; dropout is identity in eval mode.
        x_sc[...] = jnp.maximum(out, 0.0)

    @pl.when(l == num_layers - 1)
    def _():
        out_ref[...] = out                    # raw last-layer conv output


# ----------------------------- parameters ---------------------------------- #

def _linear_init(key, fan_in, fan_out):
    """PyTorch nn.Linear default init: U(-1/sqrt(fan_in), 1/sqrt(fan_in))."""
    kw, kb = jax.random.split(key)
    bound = 1.0 / jnp.sqrt(fan_in)
    w = jax.random.uniform(kw, (fan_in, fan_out), jnp.float32, -bound, bound)
    b = jax.random.uniform(kb, (1, fan_out), jnp.float32, -bound, bound)
    return w, b


def init_params(key, node_dim, edge_dim, num_layers):
    params = {"layers": []}
    keys = jax.random.split(key, num_layers + 1)
    hid = node_dim * 2
    for i in range(num_layers):
        k = jax.random.split(keys[i], 3)
        we, be = _linear_init(k[0], edge_dim, node_dim)       # GINE edge lin
        w1, b1 = _linear_init(k[1], node_dim, hid)            # MLP lin1
        w2, b2 = _linear_init(k[2], hid, node_dim)            # MLP lin2
        params["layers"].append(dict(
            We=we, be=be, W1=w1, b1=b1, W2=w2, b2=b2,
            bn_g=jnp.ones((1, hid), jnp.float32),
            bn_b=jnp.zeros((1, hid), jnp.float32),
            bn_rm=jnp.zeros((1, hid), jnp.float32),
            bn_rv=jnp.ones((1, hid), jnp.float32),
            eps=0.0,                                          # GINE eps init
        ))
    wg, bg = _linear_init(keys[-1], node_dim, node_dim)       # graph_linear
    params["Wg"], params["bg"] = wg, bg
    params["ln_node_g"] = jnp.ones((1, node_dim), jnp.float32)
    params["ln_node_b"] = jnp.zeros((1, node_dim), jnp.float32)
    params["ln_graph_g"] = jnp.ones((1, node_dim), jnp.float32)
    params["ln_graph_b"] = jnp.zeros((1, node_dim), jnp.float32)
    return params


def prepare_params(params, node_dim, edge_dim, *, bn_eps=1e-5):
    """Fold eval-mode BatchNorm into lin1, pad dims to 128 lanes, stack layers."""
    Dp = _round_up(node_dim, 128)
    Hp = _round_up(2 * node_dim, 128)
    Dep = _round_up(edge_dim, 128)
    We, W1, b1, W2, vecs = [], [], [], [], []
    for p in params["layers"]:
        scale = p["bn_g"] * jax.lax.rsqrt(p["bn_rv"] + bn_eps)      # [1, H]
        w1f = p["W1"] * scale                                       # fold BN scale
        b1f = (p["b1"] - p["bn_rm"]) * scale + p["bn_b"]            # fold BN shift
        We.append(_pad2(p["We"], Dep, Dp).astype(jnp.bfloat16))
        W1.append(_pad2(w1f, Dp, Hp))
        b1.append(_pad2(b1f, 1, Hp))
        W2.append(_pad2(p["W2"], Hp, Dp))
        # packed per-layer row vectors: row0 = 1+eps, row1 = be, row2 = b2
        v = jnp.zeros((8, Dp), jnp.float32)
        v = v.at[0, :].set(1.0 + float(p["eps"]))
        v = v.at[1, :node_dim].set(p["be"][0])
        v = v.at[2, :node_dim].set(p["b2"][0])
        vecs.append(v)
    return dict(
        We=jnp.stack(We), W1=jnp.stack(W1), b1=jnp.stack(b1), W2=jnp.stack(W2),
        vecs=jnp.stack(vecs), Dp=Dp, Hp=Hp, Dep=Dep,
    )


def _pick_vmem_limit(need_bytes):
    """Device-aware VMEM limit: never the full physical VMEM (v7x = 64 MiB)."""
    phys = 64 * 1024 * 1024                   # assume smallest (v7x) if query fails
    try:
        phys = int(pltpu.get_tpu_info().vmem_capacity_bytes)
    except Exception:
        pass
    cap = int(phys * 0.8)                     # headroom for Mosaic internal scratch
    return min(max(need_bytes, 32 * 1024 * 1024), cap)


# ----------------------------- wrapper -------------------------------------- #

def graph_encoder_gine(params, node_feature, edge_index, edge_feature, batch,
                       num_graphs):
    N, D = node_feature.shape
    E, De = edge_feature.shape
    L = len(params["layers"])

    sp = prepare_params(params, D, De)
    Dp, Hp, Dep = sp["Dp"], sp["Hp"], sp["Dep"]
    Np = _round_up(N, 128)                    # lane dim of incidence -> 128-dense
    Ep = _round_up(E, 128)                    # lane dim of dst^T     -> 128-dense

    # ---- plain-JAX glue: padding + incidence matrices (built once) --------- #
    x0 = jnp.pad(node_feature.astype(jnp.float32), ((0, Np - N), (0, Dp - D)))
    ef = jnp.pad(edge_feature.astype(jnp.float32),
                 ((0, Ep - E), (0, Dep - De))).astype(jnp.bfloat16)

    # bf16 one-hot incidence (exact for 0/1); dst stored pre-transposed.
    src_oh = jnp.pad(jax.nn.one_hot(edge_index[0], Np, dtype=jnp.bfloat16),
                     ((0, Ep - E), (0, 0)))                           # [Ep, Np]
    dstT_oh = jnp.pad(jax.nn.one_hot(edge_index[1], Np, dtype=jnp.bfloat16).T,
                      ((0, 0), (0, Ep - E)))                          # [Np, Ep]

    # ---- VMEM budget / cost model ------------------------------------------ #
    resident = (Np * Dp * 4            # x0
                + Ep * Np * 2          # src one-hot
                + Np * Ep * 2          # dst^T one-hot
                + Ep * Dep * 2         # edge features
                + Np * Dp * 4          # output block
                + Np * Dp * 4)         # x scratch
    per_layer = (Dep * Dp * 2 + Dp * Hp * 4 + Hp * 4 + Hp * Dp * 4 + 8 * Dp * 4)
    vmem_limit = _pick_vmem_limit(2 * (resident + per_layer) + (4 << 20))

    flops = int(L * (2 * Ep * Dep * Dp          # edge linear
                     + 2 * Ep * Np * Dp         # gather
                     + 2 * Np * Ep * Dp         # scatter
                     + 2 * Np * Dp * Hp + 2 * Np * Hp * Dp))   # MLP
    transcendentals = int(L * Np * Hp)          # one exp per element (Mish)
    bytes_accessed = int(Np * Dp * 4 * 2 + 2 * Ep * Np * 2 + Ep * Dep * 2
                         + L * per_layer)

    kern = functools.partial(gine_fused_kernel, num_layers=L)

    out_p = pl.pallas_call(
        kern,
        out_shape=jax.ShapeDtypeStruct((Np, Dp), jnp.float32),
        grid_spec=pltpu.PrefetchScalarGridSpec(
            num_scalar_prefetch=0,
            grid=(L,),
            in_specs=[
                pl.BlockSpec((Np, Dp), lambda l: (0, 0)),            # x0 (resident)
                pl.BlockSpec((Ep, Np), lambda l: (0, 0)),            # src one-hot (resident)
                pl.BlockSpec((Np, Ep), lambda l: (0, 0)),            # dst^T one-hot (resident)
                pl.BlockSpec((Ep, Dep), lambda l: (0, 0)),           # edge features (resident)
                pl.BlockSpec((None, 8, Dp), lambda l: (l, 0, 0)),    # packed (1+eps, be, b2)
                pl.BlockSpec((None, Dep, Dp), lambda l: (l, 0, 0)),  # We (bf16)
                pl.BlockSpec((None, Dp, Hp), lambda l: (l, 0, 0)),   # W1 (BN folded)
                pl.BlockSpec((None, 1, Hp), lambda l: (l, 0, 0)),    # b1 (BN folded)
                pl.BlockSpec((None, Hp, Dp), lambda l: (l, 0, 0)),   # W2
            ],
            out_specs=pl.BlockSpec((Np, Dp), lambda l: (0, 0)),      # raw last-layer x
            scratch_shapes=[pltpu.VMEM((Np, Dp), jnp.float32)],      # x carried across layers
        ),
        compiler_params=pltpu.CompilerParams(
            dimension_semantics=("arbitrary",),                      # layers are sequential
            vmem_limit_bytes=vmem_limit),
        cost_estimate=pl.CostEstimate(flops=flops,
                                      transcendentals=transcendentals,
                                      bytes_accessed=bytes_accessed),
    )(x0, src_oh, dstT_oh, ef, sp["vecs"],
      sp["We"], sp["W1"], sp["b1"], sp["W2"])

    # ---- tiny heads in plain XLA (negligible FLOPs, frees kernel VMEM) ----- #
    out = out_p[:N, :D]                                              # raw conv output
    local = _layernorm(out, params["ln_node_g"], params["ln_node_b"])

    # global_mean_pool consumes the RAW conv output (pre node-LayerNorm),
    # matching the PyTorch module.
    onehot_b = jax.nn.one_hot(batch, num_graphs, dtype=jnp.float32)  # [N, B]
    counts = jnp.maximum(jnp.sum(onehot_b, axis=0), 1.0)             # [B]
    pooled = (onehot_b.T @ out) / counts[:, None]                    # [B, D]
    glob = _layernorm(pooled @ params["Wg"] + params["bg"],
                      params["ln_graph_g"], params["ln_graph_b"])
    return local, glob


# ----------------------------- main ----------------------------------------- #

if __name__ == "__main__":
    node_dim, edge_dim, num_layers = 32, 16, 2
    N, E, B = 16, 32, 2                      # 2 graphs x 8 nodes, 32 edges

    key = jax.random.PRNGKey(0)
    k_par, k_x, k_e, k_src, k_dst = jax.random.split(key, 5)

    params = init_params(k_par, node_dim, edge_dim, num_layers)

    node_feature = jax.random.normal(k_x, (N, node_dim), jnp.float32)
    edge_feature = jax.random.normal(k_e, (E, edge_dim), jnp.float32)

    # edges stay within each graph: graph 0 -> nodes [0,8), graph 1 -> [8,16)
    src0 = jax.random.randint(k_src, (E // 2,), 0, 8)
    dst0 = jax.random.randint(k_dst, (E // 2,), 0, 8)
    src1 = jax.random.randint(jax.random.fold_in(k_src, 1), (E // 2,), 0, 8) + 8
    dst1 = jax.random.randint(jax.random.fold_in(k_dst, 1), (E // 2,), 0, 8) + 8
    edge_index = jnp.stack([jnp.concatenate([src0, src1]),
                            jnp.concatenate([dst0, dst1])], axis=0)        # [2, E]
    batch = jnp.concatenate([jnp.zeros((8,), jnp.int32),
                             jnp.ones((8,), jnp.int32)])                   # [N]

    local_feature, global_feature = graph_encoder_gine(
        params, node_feature, edge_index, edge_feature, batch, num_graphs=B)
    jax.block_until_ready((local_feature, global_feature))

    assert local_feature.shape == (N, node_dim)
    assert global_feature.shape == (B, node_dim)
    assert bool(jnp.all(jnp.isfinite(local_feature)))
    assert bool(jnp.all(jnp.isfinite(global_feature)))
    print("KERNEL_OK")
</pallas_src>

<mosaic_0001>
module attributes {stable_mosaic.version = 11 : i64} {
  func.func @gine_fused_kernel(%arg0: i32, %arg1: memref<128x128xf32, #tpu.memory_space<vmem>>, %arg2: memref<128x128xbf16, #tpu.memory_space<vmem>>, %arg3: memref<128x128xbf16, #tpu.memory_space<vmem>>, %arg4: memref<128x128xbf16, #tpu.memory_space<vmem>>, %arg5: memref<1x8x128xf32, #tpu.memory_space<vmem>>, %arg6: memref<1x128x128xbf16, #tpu.memory_space<vmem>>, %arg7: memref<1x128x128xf32, #tpu.memory_space<vmem>>, %arg8: memref<1x1x128xf32, #tpu.memory_space<vmem>>, %arg9: memref<1x128x128xf32, #tpu.memory_space<vmem>>, %arg10: memref<128x128xf32, #tpu.memory_space<vmem>>, %arg11: memref<128x128xf32, #tpu.memory_space<vmem>>) attributes {dimension_semantics = [#tpu.dimension_semantics<arbitrary>], iteration_bounds = array<i64: 2>, scalar_prefetch = 0 : i64, scratch_operands = 1 : i64, tpu.core_type = #tpu.core_type<tc>, window_params = [{pipeline_mode = #tpu.pipeline_mode<synchronous>, transform_indices = @transform_0, window_bounds = array<i64: 128, 128>}, {pipeline_mode = #tpu.pipeline_mode<synchronous>, transform_indices = @transform_1, window_bounds = array<i64: 128, 128>}, {pipeline_mode = #tpu.pipeline_mode<synchronous>, transform_indices = @transform_2, window_bounds = array<i64: 128, 128>}, {pipeline_mode = #tpu.pipeline_mode<synchronous>, transform_indices = @transform_3, window_bounds = array<i64: 128, 128>}, {transform_indices = @transform_4, window_bounds = array<i64: 1, 8, 128>}, {transform_indices = @transform_5, window_bounds = array<i64: 1, 128, 128>}, {transform_indices = @transform_6, window_bounds = array<i64: 1, 128, 128>}, {transform_indices = @transform_7, window_bounds = array<i64: 1, 1, 128>}, {transform_indices = @transform_8, window_bounds = array<i64: 1, 128, 128>}, {pipeline_mode = #tpu.pipeline_mode<synchronous>, transform_indices = @transform_9, window_bounds = array<i64: 128, 128>}]} {
    %c0_i32 = arith.constant 0 : i32
    %0 = arith.cmpi eq, %arg0, %c0_i32 : i32
    %1 = arith.extui %0 : i1 to i32
    %c0_i32_0 = arith.constant 0 : i32
    %2 = arith.cmpi ne, %1, %c0_i32_0 : i32
    scf.if %2 {
      %c0_35 = arith.constant 0 : index
      %c0_36 = arith.constant 0 : index
      %59 = vector.load %arg1[%c0_35, %c0_36] : memref<128x128xf32, #tpu.memory_space<vmem>>, vector<128x128xf32>
      %c0_37 = arith.constant 0 : index
      %c0_38 = arith.constant 0 : index
      %60 = vector.load %arg11[%c0_37, %c0_38] : memref<128x128xf32, #tpu.memory_space<vmem>>, vector<128x128xf32>
      tpu.vector_store %arg11[%c0_37, %c0_38], %59 {strides = array<i32>} : memref<128x128xf32, #tpu.memory_space<vmem>>, vector<128x128xf32>,
    } else {
    }
    %c0 = arith.constant 0 : index
    %c0_1 = arith.constant 0 : index
    %3 = vector.load %arg11[%c0, %c0_1] : memref<128x128xf32, #tpu.memory_space<vmem>>, vector<128x128xf32>
    %c0_2 = arith.constant 0 : index
    %c0_3 = arith.constant 0 : index
    %c0_4 = arith.constant 0 : index
    %4 = vector.load %arg5[%c0_2, %c0_3, %c0_4] : memref<1x8x128xf32, #tpu.memory_space<vmem>>, vector<1x8x128xf32>
    %5 = vector.shape_cast %4 : vector<1x8x128xf32> to vector<8x128xf32>
    %6 = vector.extract_strided_slice %5 {offsets = [0, 0], sizes = [1, 128], strides = [1, 1]} : vector<8x128xf32> to vector<1x128xf32>
    %7 = vector.extract_strided_slice %5 {offsets = [1, 0], sizes = [1, 128], strides = [1, 1]} : vector<8x128xf32> to vector<1x128xf32>
    %8 = vector.extract_strided_slice %5 {offsets = [2, 0], sizes = [1, 128], strides = [1, 1]} : vector<8x128xf32> to vector<1x128xf32>
    %c0_5 = arith.constant 0 : index
    %c0_6 = arith.constant 0 : index
    %9 = vector.load %arg4[%c0_5, %c0_6] : memref<128x128xbf16, #tpu.memory_space<vmem>>, vector<128x128xbf16>
    %c0_7 = arith.constant 0 : index
    %c0_8 = arith.constant 0 : index
    %c0_9 = arith.constant 0 : index
    %10 = vector.load %arg6[%c0_7, %c0_8, %c0_9] : memref<1x128x128xbf16, #tpu.memory_space<vmem>>, vector<1x128x128xbf16>
    %11 = vector.shape_cast %10 : vector<1x128x128xbf16> to vector<128x128xbf16>
    %cst = arith.constant dense<0.000000e+00> : vector<128x128xf32>
    %12 = tpu.matmul %9, %11, %cst {dimension_numbers = #tpu.dot_dimension_numbers<[1], [0], [0], [1], [0, 0, 1, 1], [], []>} : vector<128x128xbf16>, vector<128x128xbf16>, vector<128x128xf32> -> vector<128x128xf32>
    %13 = vector.broadcast %7 : vector<1x128xf32> to vector<128x128xf32>
    %14 = arith.addf %12, %13 : vector<128x128xf32>
    %c0_10 = arith.constant 0 : index
    %c0_11 = arith.constant 0 : index
    %15 = vector.load %arg2[%c0_10, %c0_11] : memref<128x128xbf16, #tpu.memory_space<vmem>>, vector<128x128xbf16>
    %16 = arith.truncf %3 : vector<128x128xf32> to vector<128x128xbf16>
    %cst_12 = arith.constant dense<0.000000e+00> : vector<128x128xf32>
    %17 = tpu.matmul %15, %16, %cst_12 {dimension_numbers = #tpu.dot_dimension_numbers<[1], [0], [0], [1], [0, 0, 1, 1], [], []>} : vector<128x128xbf16>, vector<128x128xbf16>, vector<128x128xf32> -> vector<128x128xf32>
    %18 = arith.addf %17, %14 : vector<128x128xf32>
    %cst_13 = arith.constant 0.000000e+00 : f32
    %19 = vector.broadcast %cst_13 : f32 to vector<128x128xf32>
    %20 = arith.maximumf %18, %19 : vector<128x128xf32>
    %c0_14 = arith.constant 0 : index
    %c0_15 = arith.constant 0 : index
    %21 = vector.load %arg3[%c0_14, %c0_15] : memref<128x128xbf16, #tpu.memory_space<vmem>>, vector<128x128xbf16>
    %22 = arith.truncf %20 : vector<128x128xf32> to vector<128x128xbf16>
    %cst_16 = arith.constant dense<0.000000e+00> : vector<128x128xf32>
    %23 = tpu.matmul %21, %22, %cst_16 {dimension_numbers = #tpu.dot_dimension_numbers<[1], [0], [0], [1], [0, 0, 1, 1], [], []>} : vector<128x128xbf16>, vector<128x128xbf16>, vector<128x128xf32> -> vector<128x128xf32>
    %24 = vector.broadcast %6 : vector<1x128xf32> to vector<128x128xf32>
    %25 = arith.mulf %3, %24 : vector<128x128xf32>
    %26 = arith.addf %25, %23 : vector<128x128xf32>
    %c0_17 = arith.constant 0 : index
    %c0_18 = arith.constant 0 : index
    %c0_19 = arith.constant 0 : index
    %27 = vector.load %arg7[%c0_17, %c0_18, %c0_19] : memref<1x128x128xf32, #tpu.memory_space<vmem>>, vector<1x128x128xf32>
    %28 = vector.shape_cast %27 : vector<1x128x128xf32> to vector<128x128xf32>
    %cst_20 = arith.constant dense<0.000000e+00> : vector<128x128xf32>
    %29 = tpu.matmul %26, %28, %cst_20 {dimension_numbers = #tpu.dot_dimension_numbers<[1], [0], [0], [1], [0, 0, 1, 1], [], []>} : vector<128x128xf32>, vector<128x128xf32>, vector<128x128xf32> -> vector<128x128xf32>
    %c0_21 = arith.constant 0 : index
    %c0_22 = arith.constant 0 : index
    %c0_23 = arith.constant 0 : index
    %30 = vector.load %arg8[%c0_21, %c0_22, %c0_23] : memref<1x1x128xf32, #tpu.memory_space<vmem>>, vector<1x1x128xf32>
    %31 = vector.shape_cast %30 : vector<1x1x128xf32> to vector<1x128xf32>
    %32 = vector.broadcast %31 : vector<1x128xf32> to vector<128x128xf32>
    %33 = arith.addf %29, %32 : vector<128x128xf32>
    %cst_24 = arith.constant 2.000000e+01 : f32
    %34 = vector.broadcast %cst_24 : f32 to vector<128x128xf32>
    %35 = arith.minimumf %33, %34 : vector<128x128xf32>
    %36 = math.exp %35 : vector<128x128xf32>
    %cst_25 = arith.constant 2.000000e+00 : f32
    %37 = vector.broadcast %cst_25 : f32 to vector<128x128xf32>
    %38 = arith.addf %36, %37 : vector<128x128xf32>
    %39 = arith.mulf %36, %38 : vector<128x128xf32>
    %cst_26 = arith.constant 2.000000e+00 : f32
    %40 = vector.broadcast %cst_26 : f32 to vector<128x128xf32>
    %41 = arith.addf %39, %40 : vector<128x128xf32>
    %42 = tpu.reciprocal %41 {approx = true} : vector<128x128xf32> -> vector<128x128xf32>
    %43 = arith.mulf %39, %42 : vector<128x128xf32>
    %cst_27 = arith.constant 2.000000e+01 : f32
    %44 = vector.broadcast %cst_27 : f32 to vector<128x128xf32>
    %45 = arith.cmpf ogt, %33, %44 : vector<128x128xf32>
    %46 = arith.mulf %33, %43 : vector<128x128xf32>
    %47 = arith.select %45, %33, %46 : vector<128x128xi1>, vector<128x128xf32>
    %c0_28 = arith.constant 0 : index
    %c0_29 = arith.constant 0 : index
    %c0_30 = arith.constant 0 : index
    %48 = vector.load %arg9[%c0_28, %c0_29, %c0_30] : memref<1x128x128xf32, #tpu.memory_space<vmem>>, vector<1x128x128xf32>
    %49 = vector.shape_cast %48 : vector<1x128x128xf32> to vector<128x128xf32>
    %cst_31 = arith.constant dense<0.000000e+00> : vector<128x128xf32>
    %50 = tpu.matmul %47, %49, %cst_31 {dimension_numbers = #tpu.dot_dimension_numbers<[1], [0], [0], [1], [0, 0, 1, 1], [], []>} : vector<128x128xf32>, vector<128x128xf32>, vector<128x128xf32> -> vector<128x128xf32>
    %51 = vector.broadcast %8 : vector<1x128xf32> to vector<128x128xf32>
    %52 = arith.addf %50, %51 : vector<128x128xf32>
    %c1_i32 = arith.constant 1 : i32
    %53 = arith.cmpi slt, %arg0, %c1_i32 : i32
    %54 = arith.extui %53 : i1 to i32
    %c0_i32_32 = arith.constant 0 : i32
    %55 = arith.cmpi ne, %54, %c0_i32_32 : i32
    scf.if %55 {
      %cst_35 = arith.constant 0.000000e+00 : f32
      %59 = vector.broadcast %cst_35 : f32 to vector<128x128xf32>
      %60 = arith.maximumf %52, %59 : vector<128x128xf32>
      %c0_36 = arith.constant 0 : index
      %c0_37 = arith.constant 0 : index
      %61 = vector.load %arg11[%c0_36, %c0_37] : memref<128x128xf32, #tpu.memory_space<vmem>>, vector<128x128xf32>
      tpu.vector_store %arg11[%c0_36, %c0_37], %60 {strides = array<i32>} : memref<128x128xf32, #tpu.memory_space<vmem>>, vector<128x128xf32>,
    } else {
    }
    %c1_i32_33 = arith.constant 1 : i32
    %56 = arith.cmpi eq, %arg0, %c1_i32_33 : i32
    %57 = arith.extui %56 : i1 to i32
    %c0_i32_34 = arith.constant 0 : i32
    %58 = arith.cmpi ne, %57, %c0_i32_34 : i32
    scf.if %58 {
      %c0_35 = arith.constant 0 : index
      %c0_36 = arith.constant 0 : index
      %59 = vector.load %arg10[%c0_35, %c0_36] : memref<128x128xf32, #tpu.memory_space<vmem>>, vector<128x128xf32>
      tpu.vector_store %arg10[%c0_35, %c0_36], %52 {strides = array<i32>} : memref<128x128xf32, #tpu.memory_space<vmem>>, vector<128x128xf32>,
    } else {
    }
    return
  }
  func.func @transform_0(%arg0: i32) -> (i32, i32) {
    %c0_i32 = arith.constant 0 : i32
    %c0_i32_0 = arith.constant 0 : i32
    %c0_i32_1 = arith.constant 0 : i32
    return %c0_i32, %c0_i32_0 : i32, i32
  }
  func.func @transform_1(%arg0: i32) -> (i32, i32) {
    %c0_i32 = arith.constant 0 : i32
    %c0_i32_0 = arith.constant 0 : i32
    %c0_i32_1 = arith.constant 0 : i32
    return %c0_i32, %c0_i32_0 : i32, i32
  }
  func.func @transform_2(%arg0: i32) -> (i32, i32) {
    %c0_i32 = arith.constant 0 : i32
    %c0_i32_0 = arith.constant 0 : i32
    %c0_i32_1 = arith.constant 0 : i32
    return %c0_i32, %c0_i32_0 : i32, i32
  }
  func.func @transform_3(%arg0: i32) -> (i32, i32) {
    %c0_i32 = arith.constant 0 : i32
    %c0_i32_0 = arith.constant 0 : i32
    %c0_i32_1 = arith.constant 0 : i32
    return %c0_i32, %c0_i32_0 : i32, i32
  }
  func.func @transform_4(%arg0: i32) -> (i32, i32, i32) {
    %c0_i32 = arith.constant 0 : i32
    %c0_i32_0 = arith.constant 0 : i32
    %c0_i32_1 = arith.constant 0 : i32
    return %arg0, %c0_i32, %c0_i32_0 : i32, i32, i32
  }
  func.func @transform_5(%arg0: i32) -> (i32, i32, i32) {
    %c0_i32 = arith.constant 0 : i32
    %c0_i32_0 = arith.constant 0 : i32
    %c0_i32_1 = arith.constant 0 : i32
    return %arg0, %c0_i32, %c0_i32_0 : i32, i32, i32
  }
  func.func @transform_6(%arg0: i32) -> (i32, i32, i32) {
    %c0_i32 = arith.constant 0 : i32
    %c0_i32_0 = arith.constant 0 : i32
    %c0_i32_1 = arith.constant 0 : i32
    return %arg0, %c0_i32, %c0_i32_0 : i32, i32, i32
  }
  func.func @transform_7(%arg0: i32) -> (i32, i32, i32) {
    %c0_i32 = arith.constant 0 : i32
    %c0_i32_0 = arith.constant 0 : i32
    %c0_i32_1 = arith.constant 0 : i32
    return %arg0, %c0_i32, %c0_i32_0 : i32, i32, i32
  }
  func.func @transform_8(%arg0: i32) -> (i32, i32, i32) {
    %c0_i32 = arith.constant 0 : i32
    %c0_i32_0 = arith.constant 0 : i32
    %c0_i32_1 = arith.constant 0 : i32
    return %arg0, %c0_i32, %c0_i32_0 : i32, i32, i32
  }
  func.func @transform_9(%arg0: i32) -> (i32, i32) {
    %c0_i32 = arith.constant 0 : i32
    %c0_i32_0 = arith.constant 0 : i32
    %c0_i32_1 = arith.constant 0 : i32
    return %c0_i32, %c0_i32_0 : i32, i32
  }
}

</mosaic_0001>

<llo_original>
// kernel: tpu_custom_call.1
$region0: #{tpu_custom_call.1}
  #allocation0 [shape = 'u32[]', space=smem, size = 0x4, offset = 0x4, fixed_abs, tag = 'smem constant byte address 0x4 - core index']
  #allocation1 [shape = 'u32[144,128]{1,0:T(1,128)}', space=vmem, size = 0x12000, scoped, tag = 'internal scratch']
  #allocation2 [shape = 'f32[128,128]{1,0:T(8,128)}', space=vmem, size = 0x10000, scoped, tag = 'scratch operand']
  %s0 = inlined_call_operand.hbm [shape: f32[128,128], index: 0, kind: input, shape index: {}]
  %s1 = inlined_call_operand.hbm [shape: bf16[128,128], index: 1, kind: input, shape index: {}]
  %s2 = inlined_call_operand.hbm [shape: bf16[128,128], index: 2, kind: input, shape index: {}]
  %s3 = inlined_call_operand.hbm [shape: bf16[128,128], index: 3, kind: input, shape index: {}]
  %s4 = inlined_call_operand.hbm [shape: f32[2,8,128], index: 4, kind: input, shape index: {}]
  %s5 = inlined_call_operand.hbm [shape: bf16[2,128,128], index: 5, kind: input, shape index: {}]
  %s6 = inlined_call_operand.hbm [shape: f32[2,128,128], index: 6, kind: input, shape index: {}]
  %s7 = inlined_call_operand.vmem [shape: f32[2,1,128], index: 7, kind: input, shape index: {}]
  %s8 = inlined_call_operand.hbm [shape: f32[2,128,128], index: 8, kind: input, shape index: {}]
  %s9 = inlined_call_operand.hbm [shape: f32[128,128], index: 9, kind: output, shape index: {}]
  %s10 = sld [smem:[#allocation0]]
  $region113: #{tpu_custom_call.1} parent=0
    _
  %s12 = ssub.s32 1, %s10
  %s13 = scalar_select 0, %s12, %s10
  $region1: #{tpu_custom_call.1} parent=0
    #allocation3 [shape = 'u8[65536]{0}', space=vmem, size = 0x10000, scoped, tag = 'input window, operand 0, single buffered']
    #allocation4 [shape = 's32[2]{0}', space=sflag, size = 0x8, scoped, tag = 'scoped memory for tpu_custom_call.1']
    #allocation5 [shape = 's32[2]{0}', space=sflag, size = 0x8, scoped, tag = 'scoped memory for tpu_custom_call.1']
    #allocation6 [shape = 'u8[32768]{0}', space=vmem, size = 0x8000, scoped, tag = 'input window, operand 1, single buffered']
    #allocation7 [shape = 's32[1]{0}', space=sflag, size = 0x4, scoped, tag = 'scoped memory for tpu_custom_call.1']
    #allocation8 [shape = 'u8[32768]{0}', space=vmem, size = 0x8000, scoped, tag = 'input window, operand 2, single buffered']
    #allocation9 [shape = 'u8[32768]{0}', space=vmem, size = 0x8000, scoped, tag = 'input window, operand 3, single buffered']
    #allocation10 [shape = 's32[1]{0}', space=sflag, size = 0x4, scoped, tag = 'scoped memory for tpu_custom_call.1']
    #allocation11 [shape = 'u8[8192]{0}', space=vmem, size = 0x2000, scoped, tag = 'input window, operand 4']
    #allocation12 [shape = 'u8[65536]{0}', space=vmem, size = 0x10000, scoped, tag = 'input window, operand 5']
    #allocation13 [shape = 'u8[131072]{0}', space=vmem, size = 0x20000, scoped, tag = 'input window, operand 6']
    #allocation14 [shape = 'u8[131072]{0}', space=vmem, size = 0x20000, scoped, tag = 'input window, operand 8']
    #allocation15 [shape = 'u8[65536]{0}', space=vmem, size = 0x10000, scoped, tag = 'output window, operand 0, single buffered']
    %14 = vsyncpa [#allocation4], 0
    %15 = vsyncpa [#allocation7], 0
    %16 = vsyncpa [#allocation10], 0
    %17 = vsyncpa [#allocation5], 0
    loop: start=0, step=1, limit=4
    $region2: #{tpu_custom_call.1} parent=1 // loop_pre_header
      _
    $region3: #{tpu_custom_call.1} parent=1 // loop_header
      %s19 = sphi 0, %s23
      %p20 = scmp.ge.s32.totalorder %s19, 4
      %s27 = sphi 0, %s27
      %s29 = sphi 0, %s27
      %s30 = sphi 0, %s29
      %s44 = sphi 0, %s30
      %s48 = sphi 0, %s48
      %s50 = sphi 0, %s48
      %s51 = sphi 0, %s50
      %s65 = sphi 0, %s51
      %s69 = sphi 0, %s69
      %s71 = sphi 0, %s69
      %s72 = sphi 0, %s71
      %s86 = sphi 0, %s72
      %s90 = sphi 0, %s90
      %s92 = sphi 0, %s90
      %s93 = sphi 0, %s92
      %s107 = sphi 0, %s93
      %s113 = sphi 0, %s115
      %s116 = sphi 0, %s113
      %s117 = sphi 0, %s116
      %s133 = sphi 0, %s117
      %s139 = sphi 0, %s141
      %s142 = sphi 0, %s139
      %s143 = sphi 0, %s142
      %s159 = sphi 0, %s143
      %s165 = sphi 0, %s167
      %s168 = sphi 0, %s165
      %s169 = sphi 0, %s168
      %s185 = sphi 0, %s169
      %s191 = sphi 0, %s193
      %s194 = sphi 0, %s191
      %s195 = sphi 0, %s194
      %s211 = sphi 0, %s195
      %s217 = sphi 0, %s219
      %s220 = sphi 0, %s217
      %s221 = sphi 0, %s220
      %s237 = sphi 0, %s221
      %s241 = sphi 0, %s241
      %s243 = sphi 0, %s241
      %s244 = sphi 0, %s243
      %s258 = sphi 0, %s244
    $region4: #{tpu_custom_call.1} parent=1 // loop_header_branch
      %22 = sbr.rel (%p20) target = $region8
    $region5: #{tpu_custom_call.1} parent=1 // loop_body
      %s24 = ssub.s32 %s19, 1
      %s25 = ssub.s32 %s19, 2
      %s26 = sadd.s32 %s19, 1
      %s28 = sadd.s32 %s27, 1
      %p31 = scmp.eq.s32.totalorder %s19, 1
      %p32 = scmp.ne.s32.totalorder %s27, %s29
      %p33 = scmp.eq.s32.totalorder %s19, 0
      %p34 = por %p32, %p33
      %p35 = scmp.ne.s32.totalorder %s27, %s29
      %p36 = scmp.eq.s32.totalorder %s24, 1
      %p37 = por %p35, %p36
      %p38 = scmp.ne.s32.totalorder %s29, %s30
      %p39 = scmp.eq.s32.totalorder %s24, 0
      %p40 = por %p38, %p39
      %p41 = scmp.ne.s32.totalorder %s29, %s30
      %p42 = scmp.eq.s32.totalorder %s25, 1
      %p43 = por %p41, %p42
      %p45 = scmp.ne.s32.totalorder %s30, %s44
      %p46 = scmp.eq.s32.totalorder %s25, 0
      %p47 = por %p45, %p46
      %s49 = sadd.s32 %s48, 1
      %p52 = scmp.eq.s32.totalorder %s19, 1
      %p53 = scmp.ne.s32.totalorder %s48, %s50
      %p54 = scmp.eq.s32.totalorder %s19, 0
      %p55 = por %p53, %p54
      %p56 = scmp.ne.s32.totalorder %s48, %s50
      %p57 = scmp.eq.s32.totalorder %s24, 1
      %p58 = por %p56, %p57
      %p59 = scmp.ne.s32.totalorder %s50, %s51
      %p60 = scmp.eq.s32.totalorder %s24, 0
      %p61 = por %p59, %p60
      %p62 = scmp.ne.s32.totalorder %s50, %s51
      %p63 = scmp.eq.s32.totalorder %s25, 1
      %p64 = por %p62, %p63
      %p66 = scmp.ne.s32.totalorder %s51, %s65
      %p67 = scmp.eq.s32.totalorder %s25, 0
      %p68 = por %p66, %p67
      %s70 = sadd.s32 %s69, 1
      %p73 = scmp.eq.s32.totalorder %s19, 1
      %p74 = scmp.ne.s32.totalorder %s69, %s71
      %p75 = scmp.eq.s32.totalorder %s19, 0
      %p76 = por %p74, %p75
      %p77 = scmp.ne.s32.totalorder %s69, %s71
      %p78 = scmp.eq.s32.totalorder %s24, 1
      %p79 = por %p77, %p78
      %p80 = scmp.ne.s32.totalorder %s71, %s72
      %p81 = scmp.eq.s32.totalorder %s24, 0
      %p82 = por %p80, %p81
      %p83 = scmp.ne.s32.totalorder %s71, %s72
      %p84 = scmp.eq.s32.totalorder %s25, 1
      %p85 = por %p83, %p84
      %p87 = scmp.ne.s32.totalorder %s72, %s86
      %p88 = scmp.eq.s32.totalorder %s25, 0
      %p89 = por %p87, %p88
      %s91 = sadd.s32 %s90, 1
      %p94 = scmp.eq.s32.totalorder %s19, 1
      %p95 = scmp.ne.s32.totalorder %s90, %s92
      %p96 = scmp.eq.s32.totalorder %s19, 0
      %p97 = por %p95, %p96
      %p98 = scmp.ne.s32.totalorder %s90, %s92
      %p99 = scmp.eq.s32.totalorder %s24, 1
      %p100 = por %p98, %p99
      %p101 = scmp.ne.s32.totalorder %s92, %s93
      %p102 = scmp.eq.s32.totalorder %s24, 0
      %p103 = por %p101, %p102
      %p104 = scmp.ne.s32.totalorder %s92, %s93
      %p105 = scmp.eq.s32.totalorder %s25, 1
      %p106 = por %p104, %p105
      %p108 = scmp.ne.s32.totalorder %s93, %s107
      %p109 = scmp.eq.s32.totalorder %s25, 0
      %p110 = por %p108, %p109
      %s111 = ssub.s32 %s19, %s26
      %p112 = scmp.eq.s32.totalorder %s111, 0
      %s114 = sadd.s32 %s113, 1
      %s115 = scalar_select %p112, %s113, %s114
      %p118 = pneg %p112
      %p119 = scmp.eq.s32.totalorder %s19, 1
      %p120 = por %p118, %p119
      %p121 = scmp.ne.s32.totalorder %s113, %s116
      %p122 = scmp.eq.s32.totalorder %s19, 0
      %p123 = por %p121, %p122
      %p124 = scmp.ne.s32.totalorder %s113, %s116
      %p125 = scmp.eq.s32.totalorder %s24, 1
      %p126 = por %p124, %p125
      %p127 = scmp.ne.s32.totalorder %s116, %s117
      %p128 = scmp.eq.s32.totalorder %s24, 0
      %p129 = por %p127, %p128
      %p130 = scmp.ne.s32.totalorder %s116, %s117
      %p131 = scmp.eq.s32.totalorder %s25, 1
      %p132 = por %p130, %p131
      %p134 = scmp.ne.s32.totalorder %s117, %s133
      %p135 = scmp.eq.s32.totalorder %s25, 0
      %p136 = por %p134, %p135
      %s137 = ssub.s32 %s19, %s26
      %p138 = scmp.eq.s32.totalorder %s137, 0
      %s140 = sadd.s32 %s139, 1
      %s141 = scalar_select %p138, %s139, %s140
      %p144 = pneg %p138
      %p145 = scmp.eq.s32.totalorder %s19, 1
      %p146 = por %p144, %p145
      %p147 = scmp.ne.s32.totalorder %s139, %s142
      %p148 = scmp.eq.s32.totalorder %s19, 0
      %p149 = por %p147, %p148
      %p150 = scmp.ne.s32.totalorder %s139, %s142
      %p151 = scmp.eq.s32.totalorder %s24, 1
      %p152 = por %p150, %p151
      %p153 = scmp.ne.s32.totalorder %s142, %s143
      %p154 = scmp.eq.s32.totalorder %s24, 0
      %p155 = por %p153, %p154
      %p156 = scmp.ne.s32.totalorder %s142, %s143
      %p157 = scmp.eq.s32.totalorder %s25, 1
      %p158 = por %p156, %p157
      %p160 = scmp.ne.s32.totalorder %s143, %s159
      %p161 = scmp.eq.s32.totalorder %s25, 0
      %p162 = por %p160, %p161
      %s163 = ssub.s32 %s19, %s26
      %p164 = scmp.eq.s32.totalorder %s163, 0
      %s166 = sadd.s32 %s165, 1
      %s167 = scalar_select %p164, %s165, %s166
      %p170 = pneg %p164
      %p171 = scmp.eq.s32.totalorder %s19, 1
      %p172 = por %p170, %p171
      %p173 = scmp.ne.s32.totalorder %s165, %s168
      %p174 = scmp.eq.s32.totalorder %s19, 0
      %p175 = por %p173, %p174
      %p176 = scmp.ne.s32.totalorder %s165, %s168
      %p177 = scmp.eq.s32.totalorder %s24, 1
      %p178 = por %p176, %p177
      %p179 = scmp.ne.s32.totalorder %s168, %s169
      %p180 = scmp.eq.s32.totalorder %s24, 0
      %p181 = por %p179, %p180
      %p182 = scmp.ne.s32.totalorder %s168, %s169
      %p183 = scmp.eq.s32.totalorder %s25, 1
      %p184 = por %p182, %p183
      %p186 = scmp.ne.s32.totalorder %s169, %s185
      %p187 = scmp.eq.s32.totalorder %s25, 0
      %p188 = por %p186, %p187
      %s189 = ssub.s32 %s19, %s26
      %p190 = scmp.eq.s32.totalorder %s189, 0
      %s192 = sadd.s32 %s191, 1
      %s193 = scalar_select %p190, %s191, %s192
      %p196 = pneg %p190
      %p197 = scmp.eq.s32.totalorder %s19, 1
      %p198 = por %p196, %p197
      %p199 = scmp.ne.s32.totalorder %s191, %s194
      %p200 = scmp.eq.s32.totalorder %s19, 0
      %p201 = por %p199, %p200
      %p202 = scmp.ne.s32.totalorder %s191, %s194
      %p203 = scmp.eq.s32.totalorder %s24, 1
      %p204 = por %p202, %p203
      %p205 = scmp.ne.s32.totalorder %s194, %s195
      %p206 = scmp.eq.s32.totalorder %s24, 0
      %p207 = por %p205, %p206
      %p208 = scmp.ne.s32.totalorder %s194, %s195
      %p209 = scmp.eq.s32.totalorder %s25, 1
      %p210 = por %p208, %p209
      %p212 = scmp.ne.s32.totalorder %s195, %s211
      %p213 = scmp.eq.s32.totalorder %s25, 0
      %p214 = por %p212, %p213
      %s215 = ssub.s32 %s19, %s26
      %p216 = scmp.eq.s32.totalorder %s215, 0
      %s218 = sadd.s32 %s217, 1
      %s219 = scalar_select %p216, %s217, %s218
      %p222 = pneg %p216
      %p223 = scmp.eq.s32.totalorder %s19, 1
      %p224 = por %p222, %p223
      %p225 = scmp.ne.s32.totalorder %s217, %s220
      %p226 = scmp.eq.s32.totalorder %s19, 0
      %p227 = por %p225, %p226
      %p228 = scmp.ne.s32.totalorder %s217, %s220
      %p229 = scmp.eq.s32.totalorder %s24, 1
      %p230 = por %p228, %p229
      %p231 = scmp.ne.s32.totalorder %s220, %s221
      %p232 = scmp.eq.s32.totalorder %s24, 0
      %p233 = por %p231, %p232
      %p234 = scmp.ne.s32.totalorder %s220, %s221
      %p235 = scmp.eq.s32.totalorder %s25, 1
      %p236 = por %p234, %p235
      %p238 = scmp.ne.s32.totalorder %s221, %s237
      %p239 = scmp.eq.s32.totalorder %s25, 0
      %p240 = por %p238, %p239
      %s242 = sadd.s32 %s241, 1
      %p245 = scmp.eq.s32.totalorder %s19, 1
      %p246 = scmp.ne.s32.totalorder %s241, %s243
      %p247 = scmp.eq.s32.totalorder %s19, 0
      %p248 = por %p246, %p247
      %p249 = scmp.ne.s32.totalorder %s241, %s243
      %p250 = scmp.eq.s32.totalorder %s24, 1
      %p251 = por %p249, %p250
      %p252 = scmp.ne.s32.totalorder %s243, %s244
      %p253 = scmp.eq.s32.totalorder %s24, 0
      %p254 = por %p252, %p253
      %p255 = scmp.ne.s32.totalorder %s243, %s244
      %p256 = scmp.eq.s32.totalorder %s25, 1
      %p257 = por %p255, %p256
      %p259 = scmp.ne.s32.totalorder %s244, %s258
      %p260 = scmp.eq.s32.totalorder %s25, 0
      %p261 = por %p259, %p260
      %p262 = scmp.le.s32.totalorder 1, %s19
      %p263 = scmp.lt.s32.totalorder %s19, 3
      %p264 = pnand %p262, %p263
      %p265 = pneg %p264
      // Predicated region
      $region9: #{tpu_custom_call.1} parent=5 // pred_check
        _
      $region10: #{tpu_custom_call.1} parent=5 // pred_check_branch
        %267 = sbr.rel (%p264) target = $region12
      $region11: #{tpu_custom_call.1} parent=5 // pred_region
        %s268 = ssub.s32 %s19, 1
        // Predicated region
        $region13: #{tpu_custom_call.1} parent=11 // pred_check
          %p269 = pneg %p40
        $region14: #{tpu_custom_call.1} parent=11 // pred_check_branch
          %271 = sbr.rel (%p269) target = $region16
        $region15: #{tpu_custom_call.1} parent=11 // pred_region
          %s273 = ssub.s32 2048, 2048
          %274 = vsyncadd [#allocation4], %s273
          %s275 = sshll.u32 [#allocation3], 4
          %s276 = int_to_ptr.vmem [resolvable:$true] %s275
          %281 = dma.hbm_to_vmem [thread:$0]  %s0, 2048, %s276, [#allocation4], 128, 128, 8
        $region16: #{tpu_custom_call.1} parent=11 // pred_fallthru
          _
        // Predicated region
        $region17: #{tpu_custom_call.1} parent=11 // pred_check
          %p282 = pneg %p61
        $region18: #{tpu_custom_call.1} parent=11 // pred_check_branch
          %284 = sbr.rel (%p282) target = $region20
        $region19: #{tpu_custom_call.1} parent=11 // pred_region
          %s286 = ssub.s32 1024, 1024
          %287 = vsyncadd [#allocation7], %s286
          %s288 = sshll.u32 [#allocation6], 4
          %s289 = int_to_ptr.vmem [resolvable:$true] %s288
          %294 = dma.hbm_to_vmem [thread:$0]  %s1, 1024, %s289, [#allocation7], 64, 64, 4
        $region20: #{tpu_custom_call.1} parent=11 // pred_fallthru
          _
        // Predicated region
        $region21: #{tpu_custom_call.1} parent=11 // pred_check
          %p295 = pneg %p82
        $region22: #{tpu_custom_call.1} parent=11 // pred_check_branch
          %297 = sbr.rel (%p295) target = $region24
        $region23: #{tpu_custom_call.1} parent=11 // pred_region
          %s299 = ssub.s32 1024, 1024
          %300 = vsyncadd [#allocation7], %s299
          %s301 = sshll.u32 [#allocation8], 4
          %s302 = int_to_ptr.vmem [resolvable:$true] %s301
          %307 = dma.hbm_to_vmem [thread:$0]  %s2, 1024, %s302, [#allocation7], 64, 64, 4
        $region24: #{tpu_custom_call.1} parent=11 // pred_fallthru
          _
        // Predicated region
        $region25: #{tpu_custom_call.1} parent=11 // pred_check
          %p308 = pneg %p103
        $region26: #{tpu_custom_call.1} parent=11 // pred_check_branch
          %310 = sbr.rel (%p308) target = $region28
        $region27: #{tpu_custom_call.1} parent=11 // pred_region
          %s312 = ssub.s32 1024, 1024
          %313 = vsyncadd [#allocation10], %s312
          %s314 = sshll.u32 [#allocation9], 4
          %s315 = int_to_ptr.vmem [resolvable:$true] %s314
          %320 = dma.hbm_to_vmem [thread:$0]  %s3, 1024, %s315, [#allocation10], 64, 64, 4
        $region28: #{tpu_custom_call.1} parent=11 // pred_fallthru
          _
      $region12: #{tpu_custom_call.1} parent=5 // pred_fallthru
        _
      %p321 = scmp.lt.s32.totalorder %s19, 2
      // Predicated region
      $region29: #{tpu_custom_call.1} parent=5 // pred_check
        %p322 = pneg %p321
      $region30: #{tpu_custom_call.1} parent=5 // pred_check_branch
        %324 = sbr.rel (%p322) target = $region32
      $region31: #{tpu_custom_call.1} parent=5 // pred_region
        // Predicated region
        $region33: #{tpu_custom_call.1} parent=31 // pred_check
          %p325 = pneg %p123
        $region34: #{tpu_custom_call.1} parent=31 // pred_check_branch
          %327 = sbr.rel (%p325) target = $region36
        $region35: #{tpu_custom_call.1} parent=31 // pred_region
          %s328 = sand.u32 %s19, 1
          %s329 = scalar_lea.sflag [#allocation4], %s328
          %s330 = sand.u32 %s113, 1
          %s331 = smul.addr %s330, 8
          %s332 = scalar_lea.vmem [#allocation11], %s331
          %s334 = ssub.s32 128, 128
          %335 = vsyncadd %s329, %s334
          %s336 = smul.addr %s19, 128
          %s337 = scalar_lea.hbm %s4, %s336
          %s339 = sshll.u32 %s332, 4
          %s340 = int_to_ptr.vmem [resolvable:$true] %s339
          %342 = dma.hbm_to_vmem [thread:$0]  %s337, 128, %s340, %s329
        $region36: #{tpu_custom_call.1} parent=31 // pred_fallthru
          _
        // Predicated region
        $region37: #{tpu_custom_call.1} parent=31 // pred_check
          %p343 = pneg %p149
        $region38: #{tpu_custom_call.1} parent=31 // pred_check_branch
          %345 = sbr.rel (%p343) target = $region40
        $region39: #{tpu_custom_call.1} parent=31 // pred_region
          %s346 = sand.u32 %s19, 1
          %s347 = scalar_lea.sflag [#allocation4], %s346
          %s348 = sand.u32 %s139, 1
          %s349 = smul.addr %s348, 64
          %s350 = scalar_lea.vmem [#allocation12], %s349
          %s352 = ssub.s32 1024, 1024
          %353 = vsyncadd %s347, %s352
          %s354 = smul.addr %s19, 16
          %s355 = smul.addr %s354, 64
          %s356 = scalar_lea.hbm %s5, %s355
          %s357 = sshll.u32 %s350, 4
          %s358 = int_to_ptr.vmem [resolvable:$true] %s357
          %363 = dma.hbm_to_vmem [thread:$0]  %s356, 1024, %s358, %s347, 64, 64, 4
        $region40: #{tpu_custom_call.1} parent=31 // pred_fallthru
          _
        // Predicated region
        $region41: #{tpu_custom_call.1} parent=31 // pred_check
          %p364 = pneg %p175
        $region42: #{tpu_custom_call.1} parent=31 // pred_check_branch
          %366 = sbr.rel (%p364) target = $region44
        $region43: #{tpu_custom_call.1} parent=31 // pred_region
          %s367 = sand.u32 %s19, 1
          %s368 = scalar_lea.sflag [#allocation4], %s367
          %s369 = sand.u32 %s165, 1
          %s370 = smul.addr %s369, 128
          %s371 = scalar_lea.vmem [#allocation13], %s370
          %s373 = ssub.s32 2048, 2048
          %374 = vsyncadd %s368, %s373
          %s375 = smul.addr %s19, 16
          %s376 = smul.addr %s375, 128
          %s377 = scalar_lea.hbm %s6, %s376
          %s378 = sshll.u32 %s371, 4
          %s379 = int_to_ptr.vmem [resolvable:$true] %s378
          %384 = dma.hbm_to_vmem [thread:$0]  %s377, 2048, %s379, %s368, 128, 128, 8
        $region44: #{tpu_custom_call.1} parent=31 // pred_fallthru
          _
        // Predicated region
        $region45: #{tpu_custom_call.1} parent=31 // pred_check
          %p385 = pneg %p201
        $region46: #{tpu_custom_call.1} parent=31 // pred_check_branch
          %387 = sbr.rel (%p385) target = $region48
        $region47: #{tpu_custom_call.1} parent=31 // pred_region
          %p388 = scmp.lt.s32.totalorder %s19, 1
          %s389 = scalar_select %p388, %s19, 1
          %s390 = scalar_lea.vmem %s7, %s389
        $region48: #{tpu_custom_call.1} parent=31 // pred_fallthru
          _
        // Predicated region
        $region49: #{tpu_custom_call.1} parent=31 // pred_check
          %p391 = pneg %p227
        $region50: #{tpu_custom_call.1} parent=31 // pred_check_branch
          %393 = sbr.rel (%p391) target = $region52
        $region51: #{tpu_custom_call.1} parent=31 // pred_region
          %s394 = sand.u32 %s19, 1
          %s395 = scalar_lea.sflag [#allocation4], %s394
          %s396 = sand.u32 %s217, 1
          %s397 = smul.addr %s396, 128
          %s398 = scalar_lea.vmem [#allocation14], %s397
          %s400 = ssub.s32 2048, 2048
          %401 = vsyncadd %s395, %s400
          %s402 = smul.addr %s19, 16
          %s403 = smul.addr %s402, 128
          %s404 = scalar_lea.hbm %s8, %s403
          %s405 = sshll.u32 %s398, 4
          %s406 = int_to_ptr.vmem [resolvable:$true] %s405
          %411 = dma.hbm_to_vmem [thread:$0]  %s404, 2048, %s406, %s395, 128, 128, 8
        $region52: #{tpu_custom_call.1} parent=31 // pred_fallthru
          _
      $region32: #{tpu_custom_call.1} parent=5 // pred_fallthru
        _
      %p412 = scmp.le.s32.totalorder 1, %s19
      %p413 = scmp.lt.s32.totalorder %s19, 3
      %p414 = pnand %p412, %p413
      %p415 = pneg %p414
      // Predicated region
      $region53: #{tpu_custom_call.1} parent=5 // pred_check
        _
      $region54: #{tpu_custom_call.1} parent=5 // pred_check_branch
        %417 = sbr.rel (%p414) target = $region56
      $region55: #{tpu_custom_call.1} parent=5 // pred_region
        %s418 = ssub.s32 %s19, 1
        // Predicated region
        $region57: #{tpu_custom_call.1} parent=55 // pred_check
          %p419 = pneg %p40
        $region58: #{tpu_custom_call.1} parent=55 // pred_check_branch
          %421 = sbr.rel (%p419) target = $region60
        $region59: #{tpu_custom_call.1} parent=55 // pred_region
          %422 = dma.done [#allocation4], 2048
        $region60: #{tpu_custom_call.1} parent=55 // pred_fallthru
          _
        // Predicated region
        $region61: #{tpu_custom_call.1} parent=55 // pred_check
          %p423 = pneg %p61
        $region62: #{tpu_custom_call.1} parent=55 // pred_check_branch
          %425 = sbr.rel (%p423) target = $region64
        $region63: #{tpu_custom_call.1} parent=55 // pred_region
          %426 = dma.done [#allocation7], 1024
        $region64: #{tpu_custom_call.1} parent=55 // pred_fallthru
          _
        // Predicated region
        $region65: #{tpu_custom_call.1} parent=55 // pred_check
          %p427 = pneg %p82
        $region66: #{tpu_custom_call.1} parent=55 // pred_check_branch
          %429 = sbr.rel (%p427) target = $region68
        $region67: #{tpu_custom_call.1} parent=55 // pred_region
          %430 = dma.done [#allocation7], 1024
        $region68: #{tpu_custom_call.1} parent=55 // pred_fallthru
          _
        // Predicated region
        $region69: #{tpu_custom_call.1} parent=55 // pred_check
          %p431 = pneg %p103
        $region70: #{tpu_custom_call.1} parent=55 // pred_check_branch
          %433 = sbr.rel (%p431) target = $region72
        $region71: #{tpu_custom_call.1} parent=55 // pred_region
          %434 = dma.done [#allocation10], 1024
        $region72: #{tpu_custom_call.1} parent=55 // pred_fallthru
          _
        %s435 = sand.u32 %s24, 1
        %s436 = scalar_lea.sflag [#allocation4], %s435
        %s437 = sand.u32 %s116, 1
        %s438 = smul.addr %s437, 8
        %s439 = scalar_lea.vmem [#allocation11], %s438
        // Predicated region
        $region73: #{tpu_custom_call.1} parent=55 // pred_check
          %p440 = pneg %p129
        $region74: #{tpu_custom_call.1} parent=55 // pred_check_branch
          %442 = sbr.rel (%p440) target = $region76
        $region75: #{tpu_custom_call.1} parent=55 // pred_region
          %443 = dma.done %s436, 128
        $region76: #{tpu_custom_call.1} parent=55 // pred_fallthru
          _
        %s444 = sand.u32 %s24, 1
        %s445 = scalar_lea.sflag [#allocation4], %s444
        %s446 = sand.u32 %s142, 1
        %s447 = smul.addr %s446, 64
        %s448 = scalar_lea.vmem [#allocation12], %s447
        // Predicated region
        $region77: #{tpu_custom_call.1} parent=55 // pred_check
          %p449 = pneg %p155
        $region78: #{tpu_custom_call.1} parent=55 // pred_check_branch
          %451 = sbr.rel (%p449) target = $region80
        $region79: #{tpu_custom_call.1} parent=55 // pred_region
          %452 = dma.done %s445, 1024
        $region80: #{tpu_custom_call.1} parent=55 // pred_fallthru
          _
        %s453 = sand.u32 %s24, 1
        %s454 = scalar_lea.sflag [#allocation4], %s453
        %s455 = sand.u32 %s168, 1
        %s456 = smul.addr %s455, 128
        %s457 = scalar_lea.vmem [#allocation13], %s456
        // Predicated region
        $region81: #{tpu_custom_call.1} parent=55 // pred_check
          %p458 = pneg %p181
        $region82: #{tpu_custom_call.1} parent=55 // pred_check_branch
          %460 = sbr.rel (%p458) target = $region84
        $region83: #{tpu_custom_call.1} parent=55 // pred_region
          %461 = dma.done %s454, 2048
        $region84: #{tpu_custom_call.1} parent=55 // pred_fallthru
          _
        %s462 = sand.u32 %s24, 1
        %s463 = scalar_lea.sflag [#allocation4], %s462
        %s464 = sand.u32 %s220, 1
        %s465 = smul.addr %s464, 128
        %s466 = scalar_lea.vmem [#allocation14], %s465
        // Predicated region
        $region85: #{tpu_custom_call.1} parent=55 // pred_check
          %p467 = pneg %p233
        $region86: #{tpu_custom_call.1} parent=55 // pred_check_branch
          %469 = sbr.rel (%p467) target = $region88
        $region87: #{tpu_custom_call.1} parent=55 // pred_region
          %470 = dma.done %s463, 2048
        $region88: #{tpu_custom_call.1} parent=55 // pred_fallthru
          _
        %p471 = pneg %p40
        %p472 = pneg %p37
        %p473 = pneg %p61
        %p474 = pneg %p58
        %p475 = pneg %p82
        %p476 = pneg %p79
        %p477 = pneg %p103
        %p478 = pneg %p100
        %s479 = sand.u32 %s24, 1
        %s480 = scalar_lea.sflag [#allocation4], %s479
        %s481 = sand.u32 %s116, 1
        %s482 = smul.addr %s481, 8
        %s483 = scalar_lea.vmem [#allocation11], %s482
        %p484 = pneg %p129
        %p485 = pneg %p126
        %s486 = sand.u32 %s24, 1
        %s487 = scalar_lea.sflag [#allocation4], %s486
        %s488 = sand.u32 %s142, 1
        %s489 = smul.addr %s488, 64
        %s490 = scalar_lea.vmem [#allocation12], %s489
        %p491 = pneg %p155
        %p492 = pneg %p152
        %s493 = sand.u32 %s24, 1
        %s494 = scalar_lea.sflag [#allocation4], %s493
        %s495 = sand.u32 %s168, 1
        %s496 = smul.addr %s495, 128
        %s497 = scalar_lea.vmem [#allocation13], %s496
        %p498 = pneg %p181
        %p499 = pneg %p178
        %p500 = scmp.lt.s32.totalorder %s24, 1
        %s501 = scalar_select %p500, %s24, 1
        %s502 = scalar_lea.vmem %s7, %s501
        %p503 = pneg %p207
        %p504 = pneg %p204
        %s505 = sand.u32 %s24, 1
        %s506 = scalar_lea.sflag [#allocation4], %s505
        %s507 = sand.u32 %s220, 1
        %s508 = smul.addr %s507, 128
        %s509 = scalar_lea.vmem [#allocation14], %s508
        %p510 = pneg %p233
        %p511 = pneg %p230
        %p512 = pneg %p254
        %p513 = pneg %p251
        %p514 = scmp.lt.s32.totalorder %s24, 1
        %s515 = scalar_select %p514, %s24, 1
        %s516 = scalar_lea.vmem %s7, %s515
        %p518 = scmp.eq.s32.totalorder %s24, 0
        // Predicated region
        $region89: #{tpu_custom_call.1} parent=55 // pred_check
          %p519 = pneg %p518
        $region90: #{tpu_custom_call.1} parent=55 // pred_check_branch
          %521 = sbr.rel (%p519) target = $region92
        $region91: #{tpu_custom_call.1} parent=55 // pred_region
          %v522 = vld [vmem:[#allocation3] sm:$0xff]
          %v523 = vld [vmem:[#allocation3 + $0x8] sm:$0xff]
          %v524 = vld [vmem:[#allocation3 + $0x10] sm:$0xff]
          %v525 = vld [vmem:[#allocation3 + $0x18] sm:$0xff]
          %v526 = vld [vmem:[#allocation3 + $0x20] sm:$0xff]
          %v527 = vld [vmem:[#allocation3 + $0x28] sm:$0xff]
          %v528 = vld [vmem:[#allocation3 + $0x30] sm:$0xff]
          %v529 = vld [vmem:[#allocation3 + $0x38] sm:$0xff]
          %v530 = vld [vmem:[#allocation3 + $0x40] sm:$0xff]
          %v531 = vld [vmem:[#allocation3 + $0x48] sm:$0xff]
          %v532 = vld [vmem:[#allocation3 + $0x50] sm:$0xff]
          %v533 = vld [vmem:[#allocation3 + $0x58] sm:$0xff]
          %v534 = vld [vmem:[#allocation3 + $0x60] sm:$0xff]
          %v535 = vld [vmem:[#allocation3 + $0x68] sm:$0xff]
          %v536 = vld [vmem:[#allocation3 + $0x70] sm:$0xff]
          %v537 = vld [vmem:[#allocation3 + $0x78] sm:$0xff]
          %538 = vst [vmem:[#allocation2] sm:$0xff] %v522
          %539 = vst [vmem:[#allocation2 + $0x8] sm:$0xff] %v523
          %540 = vst [vmem:[#allocation2 + $0x10] sm:$0xff] %v524
          %541 = vst [vmem:[#allocation2 + $0x18] sm:$0xff] %v525
          %542 = vst [vmem:[#allocation2 + $0x20] sm:$0xff] %v526
          %543 = vst [vmem:[#allocation2 + $0x28] sm:$0xff] %v527
          %544 = vst [vmem:[#allocation2 + $0x30] sm:$0xff] %v528
          %545 = vst [vmem:[#allocation2 + $0x38] sm:$0xff] %v529
          %546 = vst [vmem:[#allocation2 + $0x40] sm:$0xff] %v530
          %547 = vst [vmem:[#allocation2 + $0x48] sm:$0xff] %v531
          %548 = vst [vmem:[#allocation2 + $0x50] sm:$0xff] %v532
          %549 = vst [vmem:[#allocation2 + $0x58] sm:$0xff] %v533
          %550 = vst [vmem:[#allocation2 + $0x60] sm:$0xff] %v534
          %551 = vst [vmem:[#allocation2 + $0x68] sm:$0xff] %v535
          %552 = vst [vmem:[#allocation2 + $0x70] sm:$0xff] %v536
          %553 = vst [vmem:[#allocation2 + $0x78] sm:$0xff] %v537
        $region92: #{tpu_custom_call.1} parent=55 // pred_fallthru
          _
        %v554 = vld [vmem:[#allocation2] sm:$0xff]
        %v555 = vld [vmem:[#allocation2 + $0x8] sm:$0xff]
        %v556 = vld [vmem:[#allocation2 + $0x10] sm:$0xff]
        %v557 = vld [vmem:[#allocation2 + $0x18] sm:$0xff]
        %v558 = vld [vmem:[#allocation2 + $0x20] sm:$0xff]
        %v559 = vld [vmem:[#allocation2 + $0x28] sm:$0xff]
        %v560 = vld [vmem:[#allocation2 + $0x30] sm:$0xff]
        %v561 = vld [vmem:[#allocation2 + $0x38] sm:$0xff]
        %v562 = vld [vmem:[#allocation2 + $0x40] sm:$0xff]
        %v563 = vld [vmem:[#allocation2 + $0x48] sm:$0xff]
        %v564 = vld [vmem:[#allocation2 + $0x50] sm:$0xff]
        %v565 = vld [vmem:[#allocation2 + $0x58] sm:$0xff]
        %v566 = vld [vmem:[#allocation2 + $0x60] sm:$0xff]
        %v567 = vld [vmem:[#allocation2 + $0x68] sm:$0xff]
        %v568 = vld [vmem:[#allocation2 + $0x70] sm:$0xff]
        %v569 = vld [vmem:[#allocation2 + $0x78] sm:$0xff]
        %v570 = vld [vmem:[%s439] sm:$0xff]
        %v571 = vld [vmem:[#allocation9] sm:$0xf]
        %v572 = vld [vmem:[#allocation9 + $0x4] sm:$0xf]
        %v573 = vld [vmem:[#allocation9 + $0x8] sm:$0xf]
        %v574 = vld [vmem:[#allocation9 + $0xc] sm:$0xf]
        %v575 = vld [vmem:[#allocation9 + $0x10] sm:$0xf]
        %v576 = vld [vmem:[#allocation9 + $0x14] sm:$0xf]
        %v577 = vld [vmem:[#allocation9 + $0x18] sm:$0xf]
        %v578 = vld [vmem:[#allocation9 + $0x1c] sm:$0xf]
        %v579 = vld [vmem:[#allocation9 + $0x20] sm:$0xf]
        %v580 = vld [vmem:[#allocation9 + $0x24] sm:$0xf]
        %v581 = vld [vmem:[#allocation9 + $0x28] sm:$0xf]
        %v582 = vld [vmem:[#allocation9 + $0x2c] sm:$0xf]
        %v583 = vld [vmem:[#allocation9 + $0x30] sm:$0xf]
        %v584 = vld [vmem:[#allocation9 + $0x34] sm:$0xf]
        %v585 = vld [vmem:[#allocation9 + $0x38] sm:$0xf]
        %v586 = vld [vmem:[#allocation9 + $0x3c] sm:$0xf]
        %v587 = vld [vmem:[%s448] sm:$0xf]
        %v588 = vld [vmem:[%s448 + $0x4] sm:$0xf]
        %v589 = vld [vmem:[%s448 + $0x8] sm:$0xf]
        %v590 = vld [vmem:[%s448 + $0xc] sm:$0xf]
        %v591 = vld [vmem:[%s448 + $0x10] sm:$0xf]
        %v592 = vld [vmem:[%s448 + $0x14] sm:$0xf]
        %v593 = vld [vmem:[%s448 + $0x18] sm:$0xf]
        %v594 = vld [vmem:[%s448 + $0x1c] sm:$0xf]
        %v595 = vld [vmem:[%s448 + $0x20] sm:$0xf]
        %v596 = vld [vmem:[%s448 + $0x24] sm:$0xf]
        %v597 = vld [vmem:[%s448 + $0x28] sm:$0xf]
        %v598 = vld [vmem:[%s448 + $0x2c] sm:$0xf]
        %v599 = vld [vmem:[%s448 + $0x30] sm:$0xf]
        %v600 = vld [vmem:[%s448 + $0x34] sm:$0xf]
        %v601 = vld [vmem:[%s448 + $0x38] sm:$0xf]
        %v602 = vld [vmem:[%s448 + $0x3c] sm:$0xf]
        %v603 = vlaneseq
        %v604 = vshrl.u32 %v603, 7
        %v605 = vsub.s32 1, %v604
        %v606 = vrot.slane %v570, %v605
        %v623 = vunpack.c.l.b16 %v571
        %v624 = vunpack.c.l.b16 %v572
        %v625 = vunpack.c.l.b16 %v573
        %v626 = vunpack.c.l.b16 %v574
        %v627 = vunpack.c.l.b16 %v575
        %v628 = vunpack.c.l.b16 %v576
        %v629 = vunpack.c.l.b16 %v577
        %v630 = vunpack.c.l.b16 %v578
        %v631 = vunpack.c.l.b16 %v579
        %v632 = vunpack.c.l.b16 %v580
        %v633 = vunpack.c.l.b16 %v581
        %v634 = vunpack.c.l.b16 %v582
        %v635 = vunpack.c.l.b16 %v583
        %v636 = vunpack.c.l.b16 %v584
        %v637 = vunpack.c.l.b16 %v585
        %v638 = vunpack.c.l.b16 %v586
        %v639 = vpack.c.b16 %v624, %v623
        %v640 = vpack.c.b16 %v626, %v625
        %v641 = vpack.c.b16 %v628, %v627
        %v642 = vpack.c.b16 %v630, %v629
        %v643 = vpack.c.b16 %v632, %v631
        %v644 = vpack.c.b16 %v634, %v633
        %v645 = vpack.c.b16 %v636, %v635
        %v646 = vpack.c.b16 %v638, %v637
        %v671 = vunpack.c.l.b16 %v587
        %v672 = vunpack.c.l.b16 %v588
        %v673 = vunpack.c.l.b16 %v589
        %v674 = vunpack.c.l.b16 %v590
        %v675 = vunpack.c.l.b16 %v591
        %v676 = vunpack.c.l.b16 %v592
        %v677 = vunpack.c.l.b16 %v593
        %v678 = vunpack.c.l.b16 %v594
        %v679 = vunpack.c.l.b16 %v595
        %v680 = vunpack.c.l.b16 %v596
        %v681 = vunpack.c.l.b16 %v597
        %v682 = vunpack.c.l.b16 %v598
        %v683 = vunpack.c.l.b16 %v599
        %v684 = vunpack.c.l.b16 %v600
        %v685 = vunpack.c.l.b16 %v601
        %v686 = vunpack.c.l.b16 %v602
        %v687 = vpack.c.b16 %v672, %v671
        %v688 = vpack.c.b16 %v674, %v673
        %v689 = vpack.c.b16 %v676, %v675
        %v690 = vpack.c.b16 %v678, %v677
        %v691 = vpack.c.b16 %v680, %v679
        %v692 = vpack.c.b16 %v682, %v681
        %v693 = vpack.c.b16 %v684, %v683
        %v694 = vpack.c.b16 %v686, %v685
        %703 = vmatprep.subr.bf16.mxu0 0
        %704 = vmatpush1.bf16.msra.mxu0 %v687
        %705 = vmatprep.subr.bf16.mxu0 0
        %706 = vmatpush1.bf16.msra.mxu0 %v688
        %707 = vmatprep.subr.bf16.mxu0 0
        %708 = vmatpush1.bf16.msra.mxu0 %v689
        %709 = vmatprep.subr.bf16.mxu0 0
        %710 = vmatpush1.bf16.msra.mxu0 %v690
        %711 = vmatprep.subr.bf16.mxu0 0
        %712 = vmatpush1.bf16.msra.mxu0 %v691
        %713 = vmatprep.subr.bf16.mxu0 0
        %714 = vmatpush1.bf16.msra.mxu0 %v692
        %715 = vmatprep.subr.bf16.mxu0 0
        %716 = vmatpush1.bf16.msra.mxu0 %v693
        %717 = vmatprep.subr.bf16.mxu0 0
        %718 = vmatpush1.bf16.msra.mxu0 %v694
        %719 = vmatprep.subr.bf16.mxu0 0
        %720 = vmatpush1.bf16.msra.mxu0 0
        %721 = vmatprep.subr.bf16.mxu0 0
        %722 = vmatpush1.bf16.msra.mxu0 0
        %723 = vmatprep.subr.bf16.mxu0 0
        %724 = vmatpush1.bf16.msra.mxu0 0
        %725 = vmatprep.subr.bf16.mxu0 0
        %726 = vmatpush1.bf16.msra.mxu0 0
        %727 = vmatprep.subr.bf16.mxu0 0
        %728 = vmatpush1.bf16.msra.mxu0 0
        %729 = vmatprep.subr.bf16.mxu0 0
        %730 = vmatpush1.bf16.msra.mxu0 0
        %731 = vmatprep.subr.bf16.mxu0 0
        %732 = vmatpush1.bf16.msra.mxu0 0
        %733 = vmatprep.subr.bf16.mxu0 0
        %734 = vmatpush1.bf16.msra.mxu0 0
        %735 = vmatprep.mubr.bf16.mxu0 0
        %736 = vmatmul.mubr.bf16.gmra.mrb[0].mxu0 %v639
        %v737 = vpop.f32.mrb[0].mxu0
        %v738 = vadd.f32 %v606, %v737
        %v739 = vpop.f32.mrb[0].mxu0
        %v740 = vpop.f32.mrb[0].mxu0
        %v741 = vadd.f32 %v606, %v740
        %v742 = vpop.f32.mrb[0].mxu0
        %743 = vmatprep.mubr.bf16.mxu0 0
        %744 = vmatmul.mubr.bf16.gmra.mrb[0].mxu0 %v640
        %v745 = vpop.f32.mrb[0].mxu0
        %v746 = vadd.f32 %v606, %v745
        %v747 = vpop.f32.mrb[0].mxu0
        %v748 = vpop.f32.mrb[0].mxu0
        %v749 = vadd.f32 %v606, %v748
        %v750 = vpop.f32.mrb[0].mxu0
        %751 = vmatprep.mubr.bf16.mxu0 0
        %752 = vmatmul.mubr.bf16.gmra.mrb[0].mxu0 %v641
        %v753 = vpop.f32.mrb[0].mxu0
        %v754 = vadd.f32 %v606, %v753
        %v755 = vpop.f32.mrb[0].mxu0
        %v756 = vpop.f32.mrb[0].mxu0
        %v757 = vadd.f32 %v606, %v756
        %v758 = vpop.f32.mrb[0].mxu0
        %759 = vmatprep.mubr.bf16.mxu0 0
        %760 = vmatmul.mubr.bf16.gmra.mrb[0].mxu0 %v642
        %v761 = vpop.f32.mrb[0].mxu0
        %v762 = vadd.f32 %v606, %v761
        %v763 = vpop.f32.mrb[0].mxu0
        %v764 = vpop.f32.mrb[0].mxu0
        %v765 = vadd.f32 %v606, %v764
        %v766 = vpop.f32.mrb[0].mxu0
        %767 = vmatprep.mubr.bf16.mxu0 0
        %768 = vmatmul.mubr.bf16.gmra.mrb[0].mxu0 %v643
        %v769 = vpop.f32.mrb[0].mxu0
        %v770 = vadd.f32 %v606, %v769
        %v771 = vpop.f32.mrb[0].mxu0
        %v772 = vpop.f32.mrb[0].mxu0
        %v773 = vadd.f32 %v606, %v772
        %v774 = vpop.f32.mrb[0].mxu0
        %775 = vmatprep.mubr.bf16.mxu0 0
        %776 = vmatmul.mubr.bf16.gmra.mrb[0].mxu0 %v644
        %v777 = vpop.f32.mrb[0].mxu0
        %v778 = vadd.f32 %v606, %v777
        %v779 = vpop.f32.mrb[0].mxu0
        %v780 = vpop.f32.mrb[0].mxu0
        %v781 = vadd.f32 %v606, %v780
        %v782 = vpop.f32.mrb[0].mxu0
        %783 = vmatprep.mubr.bf16.mxu0 0
        %784 = vmatmul.mubr.bf16.gmra.mrb[0].mxu0 %v645
        %v785 = vpop.f32.mrb[0].mxu0
        %v786 = vadd.f32 %v606, %v785
        %v787 = vpop.f32.mrb[0].mxu0
        %v788 = vpop.f32.mrb[0].mxu0
        %v789 = vadd.f32 %v606, %v788
        %v790 = vpop.f32.mrb[0].mxu0
        %791 = vmatprep.mubr.bf16.mxu0 0
        %792 = vmatmul.mubr.bf16.gmra.mrb[0].mxu0 %v646
        %v793 = vpop.f32.mrb[0].mxu0
        %v794 = vadd.f32 %v606, %v793
        %v795 = vpop.f32.mrb[0].mxu0
        %v796 = vpop.f32.mrb[0].mxu0
        %v797 = vadd.f32 %v606, %v796
        %v798 = vpop.f32.mrb[0].mxu0
        %799 = vdwg.mxu0
        %v800 = vld [vmem:[#allocation6] sm:$0xf]
        %v801 = vld [vmem:[#allocation6 + $0x4] sm:$0xf]
        %v802 = vld [vmem:[#allocation6 + $0x8] sm:$0xf]
        %v803 = vld [vmem:[#allocation6 + $0xc] sm:$0xf]
        %v804 = vld [vmem:[#allocation6 + $0x10] sm:$0xf]
        %v805 = vld [vmem:[#allocation6 + $0x14] sm:$0xf]
        %v806 = vld [vmem:[#allocation6 + $0x18] sm:$0xf]
        %v807 = vld [vmem:[#allocation6 + $0x1c] sm:$0xf]
        %v808 = vld [vmem:[#allocation6 + $0x20] sm:$0xf]
        %v809 = vld [vmem:[#allocation6 + $0x24] sm:$0xf]
        %v810 = vld [vmem:[#allocation6 + $0x28] sm:$0xf]
        %v811 = vld [vmem:[#allocation6 + $0x2c] sm:$0xf]
        %v812 = vld [vmem:[#allocation6 + $0x30] sm:$0xf]
        %v813 = vld [vmem:[#allocation6 + $0x34] sm:$0xf]
        %v814 = vld [vmem:[#allocation6 + $0x38] sm:$0xf]
        %v815 = vld [vmem:[#allocation6 + $0x3c] sm:$0xf]
        %v816 = vpack.c.bf16 %v555, %v554
        %v817 = vpack.c.bf16 %v557, %v556
        %v818 = vpack.c.bf16 %v559, %v558
        %v819 = vpack.c.bf16 %v561, %v560
        %v820 = vpack.c.bf16 %v563, %v562
        %v821 = vpack.c.bf16 %v565, %v564
        %v822 = vpack.c.bf16 %v567, %v566
        %v823 = vpack.c.bf16 %v569, %v568
        %v840 = vunpack.c.l.b16 %v800
        %v841 = vunpack.c.l.b16 %v801
        %v842 = vunpack.c.l.b16 %v802
        %v843 = vunpack.c.l.b16 %v803
        %v844 = vunpack.c.l.b16 %v804
        %v845 = vunpack.c.l.b16 %v805
        %v846 = vunpack.c.l.b16 %v806
        %v847 = vunpack.c.l.b16 %v807
        %v848 = vunpack.c.l.b16 %v808
        %v849 = vunpack.c.l.b16 %v809
        %v850 = vunpack.c.l.b16 %v810
        %v851 = vunpack.c.l.b16 %v811
        %v852 = vunpack.c.l.b16 %v812
        %v853 = vunpack.c.l.b16 %v813
        %v854 = vunpack.c.l.b16 %v814
        %v855 = vunpack.c.l.b16 %v815
        %v856 = vpack.c.b16 %v841, %v840
        %v857 = vpack.c.b16 %v843, %v842
        %v858 = vpack.c.b16 %v845, %v844
        %v859 = vpack.c.b16 %v847, %v846
        %v860 = vpack.c.b16 %v849, %v848
        %v861 = vpack.c.b16 %v851, %v850
        %v862 = vpack.c.b16 %v853, %v852
        %v863 = vpack.c.b16 %v855, %v854
        %872 = vmatprep.subr.bf16.mxu0 0
        %873 = vmatpush1.bf16.msra.mxu0 %v816
        %874 = vmatprep.subr.bf16.mxu0 0
        %875 = vmatpush1.bf16.msra.mxu0 %v817
        %876 = vmatprep.subr.bf16.mxu0 0
        %877 = vmatpush1.bf16.msra.mxu0 %v818
        %878 = vmatprep.subr.bf16.mxu0 0
        %879 = vmatpush1.bf16.msra.mxu0 %v819
        %880 = vmatprep.subr.bf16.mxu0 0
        %881 = vmatpush1.bf16.msra.mxu0 %v820
        %882 = vmatprep.subr.bf16.mxu0 0
        %883 = vmatpush1.bf16.msra.mxu0 %v821
        %884 = vmatprep.subr.bf16.mxu0 0
        %885 = vmatpush1.bf16.msra.mxu0 %v822
        %886 = vmatprep.subr.bf16.mxu0 0
        %887 = vmatpush1.bf16.msra.mxu0 %v823
        %888 = vmatprep.subr.bf16.mxu0 0
        %889 = vmatpush1.bf16.msra.mxu0 0
        %890 = vmatprep.subr.bf16.mxu0 0
        %891 = vmatpush1.bf16.msra.mxu0 0
        %892 = vmatprep.subr.bf16.mxu0 0
        %893 = vmatpush1.bf16.msra.mxu0 0
        %894 = vmatprep.subr.bf16.mxu0 0
        %895 = vmatpush1.bf16.msra.mxu0 0
        %896 = vmatprep.subr.bf16.mxu0 0
        %897 = vmatpush1.bf16.msra.mxu0 0
        %898 = vmatprep.subr.bf16.mxu0 0
        %899 = vmatpush1.bf16.msra.mxu0 0
        %900 = vmatprep.subr.bf16.mxu0 0
        %901 = vmatpush1.bf16.msra.mxu0 0
        %902 = vmatprep.subr.bf16.mxu0 0
        %903 = vmatpush1.bf16.msra.mxu0 0
        %904 = vmatprep.mubr.bf16.mxu0 0
        %905 = vmatmul.mubr.bf16.gmra.mrb[0].mxu0 %v856
        %v906 = vpop.f32.mrb[0].mxu0
        %v907 = vadd.f32 %v738, %v906
        %v908 = vpop.f32.mrb[0].mxu0
        %v909 = vpop.f32.mrb[0].mxu0
        %v910 = vadd.f32 %v741, %v909
        %v911 = vpop.f32.mrb[0].mxu0
        %912 = vmatprep.mubr.bf16.mxu0 0
        %913 = vmatmul.mubr.bf16.gmra.mrb[0].mxu0 %v857
        %v914 = vpop.f32.mrb[0].mxu0
        %v915 = vadd.f32 %v746, %v914
        %v916 = vpop.f32.mrb[0].mxu0
        %v917 = vpop.f32.mrb[0].mxu0
        %v918 = vadd.f32 %v749, %v917
        %v919 = vpop.f32.mrb[0].mxu0
        %920 = vmatprep.mubr.bf16.mxu0 0
        %921 = vmatmul.mubr.bf16.gmra.mrb[0].mxu0 %v858
        %v922 = vpop.f32.mrb[0].mxu0
        %v923 = vadd.f32 %v754, %v922
        %v924 = vpop.f32.mrb[0].mxu0
        %v925 = vpop.f32.mrb[0].mxu0
        %v926 = vadd.f32 %v757, %v925
        %v927 = vpop.f32.mrb[0].mxu0
        %928 = vmatprep.mubr.bf16.mxu0 0
        %929 = vmatmul.mubr.bf16.gmra.mrb[0].mxu0 %v859
        %v930 = vpop.f32.mrb[0].mxu0
        %v931 = vadd.f32 %v762, %v930
        %v932 = vpop.f32.mrb[0].mxu0
        %v933 = vpop.f32.mrb[0].mxu0
        %v934 = vadd.f32 %v765, %v933
        %v935 = vpop.f32.mrb[0].mxu0
        %936 = vmatprep.mubr.bf16.mxu0 0
        %937 = vmatmul.mubr.bf16.gmra.mrb[0].mxu0 %v860
        %v938 = vpop.f32.mrb[0].mxu0
        %v939 = vadd.f32 %v770, %v938
        %v940 = vpop.f32.mrb[0].mxu0
        %v941 = vpop.f32.mrb[0].mxu0
        %v942 = vadd.f32 %v773, %v941
        %v943 = vpop.f32.mrb[0].mxu0
        %944 = vmatprep.mubr.bf16.mxu0 0
        %945 = vmatmul.mubr.bf16.gmra.mrb[0].mxu0 %v861
        %v946 = vpop.f32.mrb[0].mxu0
        %v947 = vadd.f32 %v778, %v946
        %v948 = vpop.f32.mrb[0].mxu0
        %v949 = vpop.f32.mrb[0].mxu0
        %v950 = vadd.f32 %v781, %v949
        %v951 = vpop.f32.mrb[0].mxu0
        %952 = vmatprep.mubr.bf16.mxu0 0
        %953 = vmatmul.mubr.bf16.gmra.mrb[0].mxu0 %v862
        %v954 = vpop.f32.mrb[0].mxu0
        %v955 = vadd.f32 %v786, %v954
        %v956 = vpop.f32.mrb[0].mxu0
        %v957 = vpop.f32.mrb[0].mxu0
        %v958 = vadd.f32 %v789, %v957
        %v959 = vpop.f32.mrb[0].mxu0
        %960 = vmatprep.mubr.bf16.mxu0 0
        %961 = vmatmul.mubr.bf16.gmra.mrb[0].mxu0 %v863
        %v962 = vpop.f32.mrb[0].mxu0
        %v963 = vadd.f32 %v794, %v962
        %v964 = vpop.f32.mrb[0].mxu0
        %v965 = vpop.f32.mrb[0].mxu0
        %v966 = vadd.f32 %v797, %v965
        %v967 = vpop.f32.mrb[0].mxu0
        %968 = vdwg.mxu0
        %v969 = vmax.f32 %v907, 0.0
        %v970 = vmax.f32 %v910, 0.0
        %v971 = vmax.f32 %v915, 0.0
        %v972 = vmax.f32 %v918, 0.0
        %v973 = vmax.f32 %v923, 0.0
        %v974 = vmax.f32 %v926, 0.0
        %v975 = vmax.f32 %v931, 0.0
        %v976 = vmax.f32 %v934, 0.0
        %v977 = vmax.f32 %v939, 0.0
        %v978 = vmax.f32 %v942, 0.0
        %v979 = vmax.f32 %v947, 0.0
        %v980 = vmax.f32 %v950, 0.0
        %v981 = vmax.f32 %v955, 0.0
        %v982 = vmax.f32 %v958, 0.0
        %v983 = vmax.f32 %v963, 0.0
        %v984 = vmax.f32 %v966, 0.0
        %v985 = vld [vmem:[#allocation8] sm:$0xf]
        %v986 = vld [vmem:[#allocation8 + $0x4] sm:$0xf]
        %v987 = vld [vmem:[#allocation8 + $0x8] sm:$0xf]
        %v988 = vld [vmem:[#allocation8 + $0xc] sm:$0xf]
        %v989 = vld [vmem:[#allocation8 + $0x10] sm:$0xf]
        %v990 = vld [vmem:[#allocation8 + $0x14] sm:$0xf]
        %v991 = vld [vmem:[#allocation8 + $0x18] sm:$0xf]
        %v992 = vld [vmem:[#allocation8 + $0x1c] sm:$0xf]
        %v993 = vld [vmem:[#allocation8 + $0x20] sm:$0xf]
        %v994 = vld [vmem:[#allocation8 + $0x24] sm:$0xf]
        %v995 = vld [vmem:[#allocation8 + $0x28] sm:$0xf]
        %v996 = vld [vmem:[#allocation8 + $0x2c] sm:$0xf]
        %v997 = vld [vmem:[#allocation8 + $0x30] sm:$0xf]
        %v998 = vld [vmem:[#allocation8 + $0x34] sm:$0xf]
        %v999 = vld [vmem:[#allocation8 + $0x38] sm:$0xf]
        %v1000 = vld [vmem:[#allocation8 + $0x3c] sm:$0xf]
        %v1001 = vpack.c.bf16 %v970, %v969
        %v1002 = vpack.c.bf16 %v972, %v971
        %v1003 = vpack.c.bf16 %v974, %v973
        %v1004 = vpack.c.bf16 %v976, %v975
        %v1005 = vpack.c.bf16 %v978, %v977
        %v1006 = vpack.c.bf16 %v980, %v979
        %v1007 = vpack.c.bf16 %v982, %v981
        %v1008 = vpack.c.bf16 %v984, %v983
        %v1025 = vunpack.c.l.b16 %v985
        %v1026 = vunpack.c.l.b16 %v986
        %v1027 = vunpack.c.l.b16 %v987
        %v1028 = vunpack.c.l.b16 %v988
        %v1029 = vunpack.c.l.b16 %v989
        %v1030 = vunpack.c.l.b16 %v990
        %v1031 = vunpack.c.l.b16 %v991
        %v1032 = vunpack.c.l.b16 %v992
        %v1033 = vunpack.c.l.b16 %v993
        %v1034 = vunpack.c.l.b16 %v994
        %v1035 = vunpack.c.l.b16 %v995
        %v1036 = vunpack.c.l.b16 %v996
        %v1037 = vunpack.c.l.b16 %v997
        %v1038 = vunpack.c.l.b16 %v998
        %v1039 = vunpack.c.l.b16 %v999
        %v1040 = vunpack.c.l.b16 %v1000
        %v1041 = vpack.c.b16 %v1026, %v1025
        %v1042 = vpack.c.b16 %v1028, %v1027
        %v1043 = vpack.c.b16 %v1030, %v1029
        %v1044 = vpack.c.b16 %v1032, %v1031
        %v1045 = vpack.c.b16 %v1034, %v1033
        %v1046 = vpack.c.b16 %v1036, %v1035
        %v1047 = vpack.c.b16 %v1038, %v1037
        %v1048 = vpack.c.b16 %v1040, %v1039
        %1057 = vmatprep.subr.bf16.mxu0 0
        %1058 = vmatpush1.bf16.msra.mxu0 %v1001
        %1059 = vmatprep.subr.bf16.mxu0 0
        %1060 = vmatpush1.bf16.msra.mxu0 %v1002
        %1061 = vmatprep.subr.bf16.mxu0 0
        %1062 = vmatpush1.bf16.msra.mxu0 %v1003
        %1063 = vmatprep.subr.bf16.mxu0 0
        %1064 = vmatpush1.bf16.msra.mxu0 %v1004
        %1065 = vmatprep.subr.bf16.mxu0 0
        %1066 = vmatpush1.bf16.msra.mxu0 %v1005
        %1067 = vmatprep.subr.bf16.mxu0 0
        %1068 = vmatpush1.bf16.msra.mxu0 %v1006
        %1069 = vmatprep.subr.bf16.mxu0 0
        %1070 = vmatpush1.bf16.msra.mxu0 %v1007
        %1071 = vmatprep.subr.bf16.mxu0 0
        %1072 = vmatpush1.bf16.msra.mxu0 %v1008
        %1073 = vmatprep.subr.bf16.mxu0 0
        %1074 = vmatpush1.bf16.msra.mxu0 0
        %1075 = vmatprep.subr.bf16.mxu0 0
        %1076 = vmatpush1.bf16.msra.mxu0 0
        %1077 = vmatprep.subr.bf16.mxu0 0
        %1078 = vmatpush1.bf16.msra.mxu0 0
        %1079 = vmatprep.subr.bf16.mxu0 0
        %1080 = vmatpush1.bf16.msra.mxu0 0
        %1081 = vmatprep.subr.bf16.mxu0 0
        %1082 = vmatpush1.bf16.msra.mxu0 0
        %1083 = vmatprep.subr.bf16.mxu0 0
        %1084 = vmatpush1.bf16.msra.mxu0 0
        %1085 = vmatprep.subr.bf16.mxu0 0
        %1086 = vmatpush1.bf16.msra.mxu0 0
        %1087 = vmatprep.subr.bf16.mxu0 0
        %1088 = vmatpush1.bf16.msra.mxu0 0
        %1089 = vmatprep.mubr.bf16.mxu0 0
        %1090 = vmatmul.mubr.bf16.gmra.mrb[0].mxu0 %v1041
        %v1091 = vpop.f32.mrb[0].mxu0
        %v1092 = vadd.f32 0.0, %v1091
        %v1093 = vpop.f32.mrb[0].mxu0
        %v1094 = vpop.f32.mrb[0].mxu0
        %v1095 = vadd.f32 0.0, %v1094
        %v1096 = vpop.f32.mrb[0].mxu0
        %1097 = vmatprep.mubr.bf16.mxu0 0
        %1098 = vmatmul.mubr.bf16.gmra.mrb[0].mxu0 %v1042
        %v1099 = vpop.f32.mrb[0].mxu0
        %v1100 = vadd.f32 0.0, %v1099
        %v1101 = vpop.f32.mrb[0].mxu0
        %v1102 = vpop.f32.mrb[0].mxu0
        %v1103 = vadd.f32 0.0, %v1102
        %v1104 = vpop.f32.mrb[0].mxu0
        %1105 = vmatprep.mubr.bf16.mxu0 0
        %1106 = vmatmul.mubr.bf16.gmra.mrb[0].mxu0 %v1043
        %v1107 = vpop.f32.mrb[0].mxu0
        %v1108 = vadd.f32 0.0, %v1107
        %v1109 = vpop.f32.mrb[0].mxu0
        %v1110 = vpop.f32.mrb[0].mxu0
        %v1111 = vadd.f32 0.0, %v1110
        %v1112 = vpop.f32.mrb[0].mxu0
        %1113 = vmatprep.mubr.bf16.mxu0 0
        %1114 = vmatmul.mubr.bf16.gmra.mrb[0].mxu0 %v1044
        %v1115 = vpop.f32.mrb[0].mxu0
        %v1116 = vadd.f32 0.0, %v1115
        %v1117 = vpop.f32.mrb[0].mxu0
        %v1118 = vpop.f32.mrb[0].mxu0
        %v1119 = vadd.f32 0.0, %v1118
        %v1120 = vpop.f32.mrb[0].mxu0
        %1121 = vmatprep.mubr.bf16.mxu0 0
        %1122 = vmatmul.mubr.bf16.gmra.mrb[0].mxu0 %v1045
        %v1123 = vpop.f32.mrb[0].mxu0
        %v1124 = vadd.f32 0.0, %v1123
        %v1125 = vpop.f32.mrb[0].mxu0
        %v1126 = vpop.f32.mrb[0].mxu0
        %v1127 = vadd.f32 0.0, %v1126
        %v1128 = vpop.f32.mrb[0].mxu0
        %1129 = vmatprep.mubr.bf16.mxu0 0
        %1130 = vmatmul.mubr.bf16.gmra.mrb[0].mxu0 %v1046
        %v1131 = vpop.f32.mrb[0].mxu0
        %v1132 = vadd.f32 0.0, %v1131
        %v1133 = vpop.f32.mrb[0].mxu0
        %v1134 = vpop.f32.mrb[0].mxu0
        %v1135 = vadd.f32 0.0, %v1134
        %v1136 = vpop.f32.mrb[0].mxu0
        %1137 = vmatprep.mubr.bf16.mxu0 0
        %1138 = vmatmul.mubr.bf16.gmra.mrb[0].mxu0 %v1047
        %v1139 = vpop.f32.mrb[0].mxu0
        %v1140 = vadd.f32 0.0, %v1139
        %v1141 = vpop.f32.mrb[0].mxu0
        %v1142 = vpop.f32.mrb[0].mxu0
        %v1143 = vadd.f32 0.0, %v1142
        %v1144 = vpop.f32.mrb[0].mxu0
        %1145 = vmatprep.mubr.bf16.mxu0 0
        %1146 = vmatmul.mubr.bf16.gmra.mrb[0].mxu0 %v1048
        %v1147 = vpop.f32.mrb[0].mxu0
        %v1148 = vadd.f32 0.0, %v1147
        %v1149 = vpop.f32.mrb[0].mxu0
        %v1150 = vpop.f32.mrb[0].mxu0
        %v1151 = vadd.f32 0.0, %v1150
        %v1152 = vpop.f32.mrb[0].mxu0
        %1153 = vdwg.mxu0
        %v1154 = vlaneseq
        %v1155 = vshrl.u32 %v1154, 7
        %v1156 = vsub.s32 0, %v1155
        %v1157 = vrot.slane %v570, %v1156
        %v1158 = vmul.f32 %v554, %v1157
        %v1159 = vmul.f32 %v555, %v1157
        %v1160 = vmul.f32 %v556, %v1157
        %v1161 = vmul.f32 %v557, %v1157
        %v1162 = vmul.f32 %v558, %v1157
        %v1163 = vmul.f32 %v559, %v1157
        %v1164 = vmul.f32 %v560, %v1157
        %v1165 = vmul.f32 %v561, %v1157
        %v1166 = vmul.f32 %v562, %v1157
        %v1167 = vmul.f32 %v563, %v1157
        %v1168 = vmul.f32 %v564, %v1157
        %v1169 = vmul.f32 %v565, %v1157
        %v1170 = vmul.f32 %v566, %v1157
        %v1171 = vmul.f32 %v567, %v1157
        %v1172 = vmul.f32 %v568, %v1157
        %v1173 = vmul.f32 %v569, %v1157
        %v1174 = vadd.f32 %v1158, %v1092
        %v1175 = vadd.f32 %v1159, %v1095
        %v1176 = vadd.f32 %v1160, %v1100
        %v1177 = vadd.f32 %v1161, %v1103
        %v1178 = vadd.f32 %v1162, %v1108
        %v1179 = vadd.f32 %v1163, %v1111
        %v1180 = vadd.f32 %v1164, %v1116
        %v1181 = vadd.f32 %v1165, %v1119
        %v1182 = vadd.f32 %v1166, %v1124
        %v1183 = vadd.f32 %v1167, %v1127
        %v1184 = vadd.f32 %v1168, %v1132
        %v1185 = vadd.f32 %v1169, %v1135
        %v1186 = vadd.f32 %v1170, %v1140
        %v1187 = vadd.f32 %v1171, %v1143
        %v1188 = vadd.f32 %v1172, %v1148
        %v1189 = vadd.f32 %v1173, %v1151
        %v1190 = vld [vmem:[%s457] sm:$0xff]
        %v1191 = vld [vmem:[%s457 + $0x8] sm:$0xff]
        %v1192 = vld [vmem:[%s457 + $0x10] sm:$0xff]
        %v1193 = vld [vmem:[%s457 + $0x18] sm:$0xff]
        %v1194 = vld [vmem:[%s457 + $0x20] sm:$0xff]
        %v1195 = vld [vmem:[%s457 + $0x28] sm:$0xff]
        %v1196 = vld [vmem:[%s457 + $0x30] sm:$0xff]
        %v1197 = vld [vmem:[%s457 + $0x38] sm:$0xff]
        %v1198 = vld [vmem:[%s457 + $0x40] sm:$0xff]
        %v1199 = vld [vmem:[%s457 + $0x48] sm:$0xff]
        %v1200 = vld [vmem:[%s457 + $0x50] sm:$0xff]
        %v1201 = vld [vmem:[%s457 + $0x58] sm:$0xff]
        %v1202 = vld [vmem:[%s457 + $0x60] sm:$0xff]
        %v1203 = vld [vmem:[%s457 + $0x68] sm:$0xff]
        %v1204 = vld [vmem:[%s457 + $0x70] sm:$0xff]
        %v1205 = vld [vmem:[%s457 + $0x78] sm:$0xff]
        %v1206 = vld [vmem:[%s516] sm:$0x1]
        %v1208 = vlaneseq
        %v1209 = vshrl.u32 %v1208, 7
        %v1210 = vsub.s32 0, %v1209
        %v1211 = vrot.slane %v1206, %v1210
        %1213 = vmatprep.subr.mxu0 0.0
        %1214 = vmatpush1.msra.mxu0 %v1190
        %1215 = vmatprep.subr.mxu0 0.0
        %1216 = vmatpush1.msra.mxu0 %v1191
        %1217 = vmatprep.subr.mxu0 0.0
        %1218 = vmatpush1.msra.mxu0 %v1192
        %1219 = vmatprep.subr.mxu0 0.0
        %1220 = vmatpush1.msra.mxu0 %v1193
        %1221 = vmatprep.subr.mxu0 0.0
        %1222 = vmatpush1.msra.mxu0 %v1194
        %1223 = vmatprep.subr.mxu0 0.0
        %1224 = vmatpush1.msra.mxu0 %v1195
        %1225 = vmatprep.subr.mxu0 0.0
        %1226 = vmatpush1.msra.mxu0 %v1196
        %1227 = vmatprep.subr.mxu0 0.0
        %1228 = vmatpush1.msra.mxu0 %v1197
        %1229 = vmatprep.subr.mxu0 0.0
        %1230 = vmatpush1.msra.mxu0 %v1198
        %1231 = vmatprep.subr.mxu0 0.0
        %1232 = vmatpush1.msra.mxu0 %v1199
        %1233 = vmatprep.subr.mxu0 0.0
        %1234 = vmatpush1.msra.mxu0 %v1200
        %1235 = vmatprep.subr.mxu0 0.0
        %1236 = vmatpush1.msra.mxu0 %v1201
        %1237 = vmatprep.subr.mxu0 0.0
        %1238 = vmatpush1.msra.mxu0 %v1202
        %1239 = vmatprep.subr.mxu0 0.0
        %1240 = vmatpush1.msra.mxu0 %v1203
        %1241 = vmatprep.subr.mxu0 0.0
        %1242 = vmatpush1.msra.mxu0 %v1204
        %1243 = vmatprep.subr.mxu0 0.0
        %1244 = vmatpush1.msra.mxu0 %v1205
        %1245 = vmatprep.subr.mxu0 0.0
        %1246 = vmatpush1.msra.mxu0 0.0
        %1247 = vmatprep.subr.mxu0 0.0
        %1248 = vmatpush1.msra.mxu0 0.0
        %1249 = vmatprep.subr.mxu0 0.0
        %1250 = vmatpush1.msra.mxu0 0.0
        %1251 = vmatprep.subr.mxu0 0.0
        %1252 = vmatpush1.msra.mxu0 0.0
        %1253 = vmatprep.subr.mxu0 0.0
        %1254 = vmatpush1.msra.mxu0 0.0
        %1255 = vmatprep.subr.mxu0 0.0
        %1256 = vmatpush1.msra.mxu0 0.0
        %1257 = vmatprep.subr.mxu0 0.0
        %1258 = vmatpush1.msra.mxu0 0.0
        %1259 = vmatprep.subr.mxu0 0.0
        %1260 = vmatpush1.msra.mxu0 0.0
        %1261 = vmatprep.subr.mxu0 0.0
        %1262 = vmatpush1.msra.mxu0 0.0
        %1263 = vmatprep.subr.mxu0 0.0
        %1264 = vmatpush1.msra.mxu0 0.0
        %1265 = vmatprep.subr.mxu0 0.0
        %1266 = vmatpush1.msra.mxu0 0.0
        %1267 = vmatprep.subr.mxu0 0.0
        %1268 = vmatpush1.msra.mxu0 0.0
        %1269 = vmatprep.subr.mxu0 0.0
        %1270 = vmatpush1.msra.mxu0 0.0
        %1271 = vmatprep.subr.mxu0 0.0
        %1272 = vmatpush1.msra.mxu0 0.0
        %1273 = vmatprep.subr.mxu0 0.0
        %1274 = vmatpush1.msra.mxu0 0.0
        %1275 = vmatprep.subr.mxu0 0.0
        %1276 = vmatpush1.msra.mxu0 0.0
        %1277 = vmatprep.mubr.f32.mxu0 0.0
        %1278 = vmatmul.mubr.f32.gmra.mrb[0].mxu0 %v1174
        %v1279 = vpop.f32.mrb[0].mxu0
        %v1280 = vadd.f32 %v1211, %v1279
        %v1281 = vpop.f32.mrb[0].mxu0
        %1282 = vmatprep.mubr.f32.mxu0 0.0
        %1283 = vmatmul.mubr.f32.gmra.mrb[0].mxu0 %v1175
        %v1284 = vpop.f32.mrb[0].mxu0
        %v1285 = vadd.f32 %v1211, %v1284
        %v1286 = vpop.f32.mrb[0].mxu0
        %1287 = vmatprep.mubr.f32.mxu0 0.0
        %1288 = vmatmul.mubr.f32.gmra.mrb[0].mxu0 %v1176
        %v1289 = vpop.f32.mrb[0].mxu0
        %v1290 = vadd.f32 %v1211, %v1289
        %v1291 = vpop.f32.mrb[0].mxu0
        %1292 = vmatprep.mubr.f32.mxu0 0.0
        %1293 = vmatmul.mubr.f32.gmra.mrb[0].mxu0 %v1177
        %v1294 = vpop.f32.mrb[0].mxu0
        %v1295 = vadd.f32 %v1211, %v1294
        %v1296 = vpop.f32.mrb[0].mxu0
        %1297 = vmatprep.mubr.f32.mxu0 0.0
        %1298 = vmatmul.mubr.f32.gmra.mrb[0].mxu0 %v1178
        %v1299 = vpop.f32.mrb[0].mxu0
        %v1300 = vadd.f32 %v1211, %v1299
        %v1301 = vpop.f32.mrb[0].mxu0
        %1302 = vmatprep.mubr.f32.mxu0 0.0
        %1303 = vmatmul.mubr.f32.gmra.mrb[0].mxu0 %v1179
        %v1304 = vpop.f32.mrb[0].mxu0
        %v1305 = vadd.f32 %v1211, %v1304
        %v1306 = vpop.f32.mrb[0].mxu0
        %1307 = vmatprep.mubr.f32.mxu0 0.0
        %1308 = vmatmul.mubr.f32.gmra.mrb[0].mxu0 %v1180
        %v1309 = vpop.f32.mrb[0].mxu0
        %v1310 = vadd.f32 %v1211, %v1309
        %v1311 = vpop.f32.mrb[0].mxu0
        %1312 = vmatprep.mubr.f32.mxu0 0.0
        %1313 = vmatmul.mubr.f32.gmra.mrb[0].mxu0 %v1181
        %v1314 = vpop.f32.mrb[0].mxu0
        %v1315 = vadd.f32 %v1211, %v1314
        %v1316 = vpop.f32.mrb[0].mxu0
        %1317 = vmatprep.mubr.f32.mxu0 0.0
        %1318 = vmatmul.mubr.f32.gmra.mrb[0].mxu0 %v1182
        %v1319 = vpop.f32.mrb[0].mxu0
        %v1320 = vadd.f32 %v1211, %v1319
        %v1321 = vpop.f32.mrb[0].mxu0
        %1322 = vmatprep.mubr.f32.mxu0 0.0
        %1323 = vmatmul.mubr.f32.gmra.mrb[0].mxu0 %v1183
        %v1324 = vpop.f32.mrb[0].mxu0
        %v1325 = vadd.f32 %v1211, %v1324
        %v1326 = vpop.f32.mrb[0].mxu0
        %1327 = vmatprep.mubr.f32.mxu0 0.0
        %1328 = vmatmul.mubr.f32.gmra.mrb[0].mxu0 %v1184
        %v1329 = vpop.f32.mrb[0].mxu0
        %v1330 = vadd.f32 %v1211, %v1329
        %v1331 = vpop.f32.mrb[0].mxu0
        %1332 = vmatprep.mubr.f32.mxu0 0.0
        %1333 = vmatmul.mubr.f32.gmra.mrb[0].mxu0 %v1185
        %v1334 = vpop.f32.mrb[0].mxu0
        %v1335 = vadd.f32 %v1211, %v1334
        %v1336 = vpop.f32.mrb[0].mxu0
        %1337 = vmatprep.mubr.f32.mxu0 0.0
        %1338 = vmatmul.mubr.f32.gmra.mrb[0].mxu0 %v1186
        %v1339 = vpop.f32.mrb[0].mxu0
        %v1340 = vadd.f32 %v1211, %v1339
        %v1341 = vpop.f32.mrb[0].mxu0
        %1342 = vmatprep.mubr.f32.mxu0 0.0
        %1343 = vmatmul.mubr.f32.gmra.mrb[0].mxu0 %v1187
        %v1344 = vpop.f32.mrb[0].mxu0
        %v1345 = vadd.f32 %v1211, %v1344
        %v1346 = vpop.f32.mrb[0].mxu0
        %1347 = vmatprep.mubr.f32.mxu0 0.0
        %1348 = vmatmul.mubr.f32.gmra.mrb[0].mxu0 %v1188
        %v1349 = vpop.f32.mrb[0].mxu0
        %v1350 = vadd.f32 %v1211, %v1349
        %v1351 = vpop.f32.mrb[0].mxu0
        %1352 = vmatprep.mubr.f32.mxu0 0.0
        %1353 = vmatmul.mubr.f32.gmra.mrb[0].mxu0 %v1189
        %v1354 = vpop.f32.mrb[0].mxu0
        %v1355 = vadd.f32 %v1211, %v1354
        %v1356 = vpop.f32.mrb[0].mxu0
        %1357 = vdwg.mxu0
        %v1358 = vmin.f32 %v1280, 20.0
        %v1359 = vmin.f32 %v1285, 20.0
        %v1360 = vmin.f32 %v1290, 20.0
        %v1361 = vmin.f32 %v1295, 20.0
        %v1362 = vmin.f32 %v1300, 20.0
        %v1363 = vmin.f32 %v1305, 20.0
        %v1364 = vmin.f32 %v1310, 20.0
        %v1365 = vmin.f32 %v1315, 20.0
        %v1366 = vmin.f32 %v1320, 20.0
        %v1367 = vmin.f32 %v1325, 20.0
        %v1368 = vmin.f32 %v1330, 20.0
        %v1369 = vmin.f32 %v1335, 20.0
        %v1370 = vmin.f32 %v1340, 20.0
        %v1371 = vmin.f32 %v1345, 20.0
        %v1372 = vmin.f32 %v1350, 20.0
        %v1373 = vmin.f32 %v1355, 20.0
        %v1374 = vmul.f32 %v1358, 1.442695
        %v1375 = vpow.pop %v1374
        %v1376 = vmul.f32 %v1359, 1.442695
        %v1377 = vpow.pop %v1376
        %v1378 = vmul.f32 %v1360, 1.442695
        %v1379 = vpow.pop %v1378
        %v1380 = vmul.f32 %v1361, 1.442695
        %v1381 = vpow.pop %v1380
        %v1382 = vmul.f32 %v1362, 1.442695
        %v1383 = vpow.pop %v1382
        %v1384 = vmul.f32 %v1363, 1.442695
        %v1385 = vpow.pop %v1384
        %v1386 = vmul.f32 %v1364, 1.442695
        %v1387 = vpow.pop %v1386
        %v1388 = vmul.f32 %v1365, 1.442695
        %v1389 = vpow.pop %v1388
        %v1390 = vmul.f32 %v1366, 1.442695
        %v1391 = vpow.pop %v1390
        %v1392 = vmul.f32 %v1367, 1.442695
        %v1393 = vpow.pop %v1392
        %v1394 = vmul.f32 %v1368, 1.442695
        %v1395 = vpow.pop %v1394
        %v1396 = vmul.f32 %v1369, 1.442695
        %v1397 = vpow.pop %v1396
        %v1398 = vmul.f32 %v1370, 1.442695
        %v1399 = vpow.pop %v1398
        %v1400 = vmul.f32 %v1371, 1.442695
        %v1401 = vpow.pop %v1400
        %v1402 = vmul.f32 %v1372, 1.442695
        %v1403 = vpow.pop %v1402
        %v1404 = vmul.f32 %v1373, 1.442695
        %v1405 = vpow.pop %v1404
        %v1406 = vadd.f32 %v1375, 2.0
        %v1407 = vadd.f32 %v1377, 2.0
        %v1408 = vadd.f32 %v1379, 2.0
        %v1409 = vadd.f32 %v1381, 2.0
        %v1410 = vadd.f32 %v1383, 2.0
        %v1411 = vadd.f32 %v1385, 2.0
        %v1412 = vadd.f32 %v1387, 2.0
        %v1413 = vadd.f32 %v1389, 2.0
        %v1414 = vadd.f32 %v1391, 2.0
        %v1415 = vadd.f32 %v1393, 2.0
        %v1416 = vadd.f32 %v1395, 2.0
        %v1417 = vadd.f32 %v1397, 2.0
        %v1418 = vadd.f32 %v1399, 2.0
        %v1419 = vadd.f32 %v1401, 2.0
        %v1420 = vadd.f32 %v1403, 2.0
        %v1421 = vadd.f32 %v1405, 2.0
        %v1422 = vmul.f32 %v1375, %v1406
        %v1423 = vmul.f32 %v1377, %v1407
        %v1424 = vmul.f32 %v1379, %v1408
        %v1425 = vmul.f32 %v1381, %v1409
        %v1426 = vmul.f32 %v1383, %v1410
        %v1427 = vmul.f32 %v1385, %v1411
        %v1428 = vmul.f32 %v1387, %v1412
        %v1429 = vmul.f32 %v1389, %v1413
        %v1430 = vmul.f32 %v1391, %v1414
        %v1431 = vmul.f32 %v1393, %v1415
        %v1432 = vmul.f32 %v1395, %v1416
        %v1433 = vmul.f32 %v1397, %v1417
        %v1434 = vmul.f32 %v1399, %v1418
        %v1435 = vmul.f32 %v1401, %v1419
        %v1436 = vmul.f32 %v1403, %v1420
        %v1437 = vmul.f32 %v1405, %v1421
        %v1438 = vadd.f32 %v1422, 2.0
        %v1439 = vadd.f32 %v1423, 2.0
        %v1440 = vadd.f32 %v1424, 2.0
        %v1441 = vadd.f32 %v1425, 2.0
        %v1442 = vadd.f32 %v1426, 2.0
        %v1443 = vadd.f32 %v1427, 2.0
        %v1444 = vadd.f32 %v1428, 2.0
        %v1445 = vadd.f32 %v1429, 2.0
        %v1446 = vadd.f32 %v1430, 2.0
        %v1447 = vadd.f32 %v1431, 2.0
        %v1448 = vadd.f32 %v1432, 2.0
        %v1449 = vadd.f32 %v1433, 2.0
        %v1450 = vadd.f32 %v1434, 2.0
        %v1451 = vadd.f32 %v1435, 2.0
        %v1452 = vadd.f32 %v1436, 2.0
        %v1453 = vadd.f32 %v1437, 2.0
        %v1454 = vrcp.pop %v1438
        %v1455 = vrcp.pop %v1439
        %v1456 = vrcp.pop %v1440
        %v1457 = vrcp.pop %v1441
        %v1458 = vrcp.pop %v1442
        %v1459 = vrcp.pop %v1443
        %v1460 = vrcp.pop %v1444
        %v1461 = vrcp.pop %v1445
        %v1462 = vrcp.pop %v1446
        %v1463 = vrcp.pop %v1447
        %v1464 = vrcp.pop %v1448
        %v1465 = vrcp.pop %v1449
        %v1466 = vrcp.pop %v1450
        %v1467 = vrcp.pop %v1451
        %v1468 = vrcp.pop %v1452
        %v1469 = vrcp.pop %v1453
        %v1470 = vmul.f32 %v1422, %v1454
        %v1471 = vmul.f32 %v1423, %v1455
        %v1472 = vmul.f32 %v1424, %v1456
        %v1473 = vmul.f32 %v1425, %v1457
        %v1474 = vmul.f32 %v1426, %v1458
        %v1475 = vmul.f32 %v1427, %v1459
        %v1476 = vmul.f32 %v1428, %v1460
        %v1477 = vmul.f32 %v1429, %v1461
        %v1478 = vmul.f32 %v1430, %v1462
        %v1479 = vmul.f32 %v1431, %v1463
        %v1480 = vmul.f32 %v1432, %v1464
        %v1481 = vmul.f32 %v1433, %v1465
        %v1482 = vmul.f32 %v1434, %v1466
        %v1483 = vmul.f32 %v1435, %v1467
        %v1484 = vmul.f32 %v1436, %v1468
        %v1485 = vmul.f32 %v1437, %v1469
        %vm1486 = vcmp.gt.f32.partialorder %v1280, 20.0
        %vm1487 = vcmp.gt.f32.partialorder %v1285, 20.0
        %vm1488 = vcmp.gt.f32.partialorder %v1290, 20.0
        %vm1489 = vcmp.gt.f32.partialorder %v1295, 20.0
        %vm1490 = vcmp.gt.f32.partialorder %v1300, 20.0
        %vm1491 = vcmp.gt.f32.partialorder %v1305, 20.0
        %vm1492 = vcmp.gt.f32.partialorder %v1310, 20.0
        %vm1493 = vcmp.gt.f32.partialorder %v1315, 20.0
        %vm1494 = vcmp.gt.f32.partialorder %v1320, 20.0
        %vm1495 = vcmp.gt.f32.partialorder %v1325, 20.0
        %vm1496 = vcmp.gt.f32.partialorder %v1330, 20.0
        %vm1497 = vcmp.gt.f32.partialorder %v1335, 20.0
        %vm1498 = vcmp.gt.f32.partialorder %v1340, 20.0
        %vm1499 = vcmp.gt.f32.partialorder %v1345, 20.0
        %vm1500 = vcmp.gt.f32.partialorder %v1350, 20.0
        %vm1501 = vcmp.gt.f32.partialorder %v1355, 20.0
        %v1502 = vmul.f32 %v1280, %v1470
        %v1503 = vmul.f32 %v1285, %v1471
        %v1504 = vmul.f32 %v1290, %v1472
        %v1505 = vmul.f32 %v1295, %v1473
        %v1506 = vmul.f32 %v1300, %v1474
        %v1507 = vmul.f32 %v1305, %v1475
        %v1508 = vmul.f32 %v1310, %v1476
        %v1509 = vmul.f32 %v1315, %v1477
        %v1510 = vmul.f32 %v1320, %v1478
        %v1511 = vmul.f32 %v1325, %v1479
        %v1512 = vmul.f32 %v1330, %v1480
        %v1513 = vmul.f32 %v1335, %v1481
        %v1514 = vmul.f32 %v1340, %v1482
        %v1515 = vmul.f32 %v1345, %v1483
        %v1516 = vmul.f32 %v1350, %v1484
        %v1517 = vmul.f32 %v1355, %v1485
        %v1518 = vsel %vm1486, %v1280, %v1502
        %v1519 = vsel %vm1487, %v1285, %v1503
        %v1520 = vsel %vm1488, %v1290, %v1504
        %v1521 = vsel %vm1489, %v1295, %v1505
        %v1522 = vsel %vm1490, %v1300, %v1506
        %v1523 = vsel %vm1491, %v1305, %v1507
        %v1524 = vsel %vm1492, %v1310, %v1508
        %v1525 = vsel %vm1493, %v1315, %v1509
        %v1526 = vsel %vm1494, %v1320, %v1510
        %v1527 = vsel %vm1495, %v1325, %v1511
        %v1528 = vsel %vm1496, %v1330, %v1512
        %v1529 = vsel %vm1497, %v1335, %v1513
        %v1530 = vsel %vm1498, %v1340, %v1514
        %v1531 = vsel %vm1499, %v1345, %v1515
        %v1532 = vsel %vm1500, %v1350, %v1516
        %v1533 = vsel %vm1501, %v1355, %v1517
        %v1534 = vld [vmem:[%s466] sm:$0xff]
        %v1535 = vld [vmem:[%s466 + $0x8] sm:$0xff]
        %v1536 = vld [vmem:[%s466 + $0x10] sm:$0xff]
        %v1537 = vld [vmem:[%s466 + $0x18] sm:$0xff]
        %v1538 = vld [vmem:[%s466 + $0x20] sm:$0xff]
        %v1539 = vld [vmem:[%s466 + $0x28] sm:$0xff]
        %v1540 = vld [vmem:[%s466 + $0x30] sm:$0xff]
        %v1541 = vld [vmem:[%s466 + $0x38] sm:$0xff]
        %v1542 = vld [vmem:[%s466 + $0x40] sm:$0xff]
        %v1543 = vld [vmem:[%s466 + $0x48] sm:$0xff]
        %v1544 = vld [vmem:[%s466 + $0x50] sm:$0xff]
        %v1545 = vld [vmem:[%s466 + $0x58] sm:$0xff]
        %v1546 = vld [vmem:[%s466 + $0x60] sm:$0xff]
        %v1547 = vld [vmem:[%s466 + $0x68] sm:$0xff]
        %v1548 = vld [vmem:[%s466 + $0x70] sm:$0xff]
        %v1549 = vld [vmem:[%s466 + $0x78] sm:$0xff]
        %v1550 = vlaneseq
        %v1551 = vshrl.u32 %v1550, 7
        %v1552 = vsub.s32 2, %v1551
        %v1553 = vrot.slane %v570, %v1552
        %1554 = vmatprep.subr.mxu0 0.0
        %1555 = vmatpush1.msra.mxu0 %v1534
        %1556 = vmatprep.subr.mxu0 0.0
        %1557 = vmatpush1.msra.mxu0 %v1535
        %1558 = vmatprep.subr.mxu0 0.0
        %1559 = vmatpush1.msra.mxu0 %v1536
        %1560 = vmatprep.subr.mxu0 0.0
        %1561 = vmatpush1.msra.mxu0 %v1537
        %1562 = vmatprep.subr.mxu0 0.0
        %1563 = vmatpush1.msra.mxu0 %v1538
        %1564 = vmatprep.subr.mxu0 0.0
        %1565 = vmatpush1.msra.mxu0 %v1539
        %1566 = vmatprep.subr.mxu0 0.0
        %1567 = vmatpush1.msra.mxu0 %v1540
        %1568 = vmatprep.subr.mxu0 0.0
        %1569 = vmatpush1.msra.mxu0 %v1541
        %1570 = vmatprep.subr.mxu0 0.0
        %1571 = vmatpush1.msra.mxu0 %v1542
        %1572 = vmatprep.subr.mxu0 0.0
        %1573 = vmatpush1.msra.mxu0 %v1543
        %1574 = vmatprep.subr.mxu0 0.0
        %1575 = vmatpush1.msra.mxu0 %v1544
        %1576 = vmatprep.subr.mxu0 0.0
        %1577 = vmatpush1.msra.mxu0 %v1545
        %1578 = vmatprep.subr.mxu0 0.0
        %1579 = vmatpush1.msra.mxu0 %v1546
        %1580 = vmatprep.subr.mxu0 0.0
        %1581 = vmatpush1.msra.mxu0 %v1547
        %1582 = vmatprep.subr.mxu0 0.0
        %1583 = vmatpush1.msra.mxu0 %v1548
        %1584 = vmatprep.subr.mxu0 0.0
        %1585 = vmatpush1.msra.mxu0 %v1549
        %1586 = vmatprep.subr.mxu0 0.0
        %1587 = vmatpush1.msra.mxu0 0.0
        %1588 = vmatprep.subr.mxu0 0.0
        %1589 = vmatpush1.msra.mxu0 0.0
        %1590 = vmatprep.subr.mxu0 0.0
        %1591 = vmatpush1.msra.mxu0 0.0
        %1592 = vmatprep.subr.mxu0 0.0
        %1593 = vmatpush1.msra.mxu0 0.0
        %1594 = vmatprep.subr.mxu0 0.0
        %1595 = vmatpush1.msra.mxu0 0.0
        %1596 = vmatprep.subr.mxu0 0.0
        %1597 = vmatpush1.msra.mxu0 0.0
        %1598 = vmatprep.subr.mxu0 0.0
        %1599 = vmatpush1.msra.mxu0 0.0
        %1600 = vmatprep.subr.mxu0 0.0
        %1601 = vmatpush1.msra.mxu0 0.0
        %1602 = vmatprep.subr.mxu0 0.0
        %1603 = vmatpush1.msra.mxu0 0.0
        %1604 = vmatprep.subr.mxu0 0.0
        %1605 = vmatpush1.msra.mxu0 0.0
        %1606 = vmatprep.subr.mxu0 0.0
        %1607 = vmatpush1.msra.mxu0 0.0
        %1608 = vmatprep.subr.mxu0 0.0
        %1609 = vmatpush1.msra.mxu0 0.0
        %1610 = vmatprep.subr.mxu0 0.0
        %1611 = vmatpush1.msra.mxu0 0.0
        %1612 = vmatprep.subr.mxu0 0.0
        %1613 = vmatpush1.msra.mxu0 0.0
        %1614 = vmatprep.subr.mxu0 0.0
        %1615 = vmatpush1.msra.mxu0 0.0
        %1616 = vmatprep.subr.mxu0 0.0
        %1617 = vmatpush1.msra.mxu0 0.0
        %1618 = vmatprep.mubr.f32.mxu0 0.0
        %1619 = vmatmul.mubr.f32.gmra.mrb[0].mxu0 %v1518
        %v1620 = vpop.f32.mrb[0].mxu0
        %v1621 = vadd.f32 %v1553, %v1620
        %v1622 = vpop.f32.mrb[0].mxu0
        %1623 = vmatprep.mubr.f32.mxu0 0.0
        %1624 = vmatmul.mubr.f32.gmra.mrb[0].mxu0 %v1519
        %v1625 = vpop.f32.mrb[0].mxu0
        %v1626 = vadd.f32 %v1553, %v1625
        %v1627 = vpop.f32.mrb[0].mxu0
        %1628 = vmatprep.mubr.f32.mxu0 0.0
        %1629 = vmatmul.mubr.f32.gmra.mrb[0].mxu0 %v1520
        %v1630 = vpop.f32.mrb[0].mxu0
        %v1631 = vadd.f32 %v1553, %v1630
        %v1632 = vpop.f32.mrb[0].mxu0
        %1633 = vmatprep.mubr.f32.mxu0 0.0
        %1634 = vmatmul.mubr.f32.gmra.mrb[0].mxu0 %v1521
        %v1635 = vpop.f32.mrb[0].mxu0
        %v1636 = vadd.f32 %v1553, %v1635
        %v1637 = vpop.f32.mrb[0].mxu0
        %1638 = vmatprep.mubr.f32.mxu0 0.0
        %1639 = vmatmul.mubr.f32.gmra.mrb[0].mxu0 %v1522
        %v1640 = vpop.f32.mrb[0].mxu0
        %v1641 = vadd.f32 %v1553, %v1640
        %v1642 = vpop.f32.mrb[0].mxu0
        %1643 = vmatprep.mubr.f32.mxu0 0.0
        %1644 = vmatmul.mubr.f32.gmra.mrb[0].mxu0 %v1523
        %v1645 = vpop.f32.mrb[0].mxu0
        %v1646 = vadd.f32 %v1553, %v1645
        %v1647 = vpop.f32.mrb[0].mxu0
        %1648 = vmatprep.mubr.f32.mxu0 0.0
        %1649 = vmatmul.mubr.f32.gmra.mrb[0].mxu0 %v1524
        %v1650 = vpop.f32.mrb[0].mxu0
        %v1651 = vadd.f32 %v1553, %v1650
        %v1652 = vpop.f32.mrb[0].mxu0
        %1653 = vmatprep.mubr.f32.mxu0 0.0
        %1654 = vmatmul.mubr.f32.gmra.mrb[0].mxu0 %v1525
        %v1655 = vpop.f32.mrb[0].mxu0
        %v1656 = vadd.f32 %v1553, %v1655
        %v1657 = vpop.f32.mrb[0].mxu0
        %1658 = vmatprep.mubr.f32.mxu0 0.0
        %1659 = vmatmul.mubr.f32.gmra.mrb[0].mxu0 %v1526
        %v1660 = vpop.f32.mrb[0].mxu0
        %v1661 = vadd.f32 %v1553, %v1660
        %v1662 = vpop.f32.mrb[0].mxu0
        %1663 = vmatprep.mubr.f32.mxu0 0.0
        %1664 = vmatmul.mubr.f32.gmra.mrb[0].mxu0 %v1527
        %v1665 = vpop.f32.mrb[0].mxu0
        %v1666 = vadd.f32 %v1553, %v1665
        %v1667 = vpop.f32.mrb[0].mxu0
        %1668 = vmatprep.mubr.f32.mxu0 0.0
        %1669 = vmatmul.mubr.f32.gmra.mrb[0].mxu0 %v1528
        %v1670 = vpop.f32.mrb[0].mxu0
        %v1671 = vadd.f32 %v1553, %v1670
        %v1672 = vpop.f32.mrb[0].mxu0
        %1673 = vmatprep.mubr.f32.mxu0 0.0
        %1674 = vmatmul.mubr.f32.gmra.mrb[0].mxu0 %v1529
        %v1675 = vpop.f32.mrb[0].mxu0
        %v1676 = vadd.f32 %v1553, %v1675
        %v1677 = vpop.f32.mrb[0].mxu0
        %1678 = vmatprep.mubr.f32.mxu0 0.0
        %1679 = vmatmul.mubr.f32.gmra.mrb[0].mxu0 %v1530
        %v1680 = vpop.f32.mrb[0].mxu0
        %v1681 = vadd.f32 %v1553, %v1680
        %v1682 = vpop.f32.mrb[0].mxu0
        %1683 = vmatprep.mubr.f32.mxu0 0.0
        %1684 = vmatmul.mubr.f32.gmra.mrb[0].mxu0 %v1531
        %v1685 = vpop.f32.mrb[0].mxu0
        %v1686 = vadd.f32 %v1553, %v1685
        %v1687 = vpop.f32.mrb[0].mxu0
        %1688 = vmatprep.mubr.f32.mxu0 0.0
        %1689 = vmatmul.mubr.f32.gmra.mrb[0].mxu0 %v1532
        %v1690 = vpop.f32.mrb[0].mxu0
        %v1691 = vadd.f32 %v1553, %v1690
        %v1692 = vpop.f32.mrb[0].mxu0
        %1693 = vmatprep.mubr.f32.mxu0 0.0
        %1694 = vmatmul.mubr.f32.gmra.mrb[0].mxu0 %v1533
        %v1695 = vpop.f32.mrb[0].mxu0
        %v1696 = vadd.f32 %v1553, %v1695
        %v1697 = vpop.f32.mrb[0].mxu0
        %1698 = vdwg.mxu0
        %p1699 = scmp.lt.s32.totalorder %s24, 1
        // Predicated region
        $region93: #{tpu_custom_call.1} parent=55 // pred_check
          %p1700 = pneg %p1699
        $region94: #{tpu_custom_call.1} parent=55 // pred_check_branch
          %1702 = sbr.rel (%p1700) target = $region96
        $region95: #{tpu_custom_call.1} parent=55 // pred_region
          %v1703 = vmax.f32 %v1621, 0.0
          %v1704 = vmax.f32 %v1626, 0.0
          %v1705 = vmax.f32 %v1631, 0.0
          %v1706 = vmax.f32 %v1636, 0.0
          %v1707 = vmax.f32 %v1641, 0.0
          %v1708 = vmax.f32 %v1646, 0.0
          %v1709 = vmax.f32 %v1651, 0.0
          %v1710 = vmax.f32 %v1656, 0.0
          %v1711 = vmax.f32 %v1661, 0.0
          %v1712 = vmax.f32 %v1666, 0.0
          %v1713 = vmax.f32 %v1671, 0.0
          %v1714 = vmax.f32 %v1676, 0.0
          %v1715 = vmax.f32 %v1681, 0.0
          %v1716 = vmax.f32 %v1686, 0.0
          %v1717 = vmax.f32 %v1691, 0.0
          %v1718 = vmax.f32 %v1696, 0.0
          %1719 = vst [vmem:[#allocation2] sm:$0xff] %v1703
          %1720 = vst [vmem:[#allocation2 + $0x8] sm:$0xff] %v1704
          %1721 = vst [vmem:[#allocation2 + $0x10] sm:$0xff] %v1705
          %1722 = vst [vmem:[#allocation2 + $0x18] sm:$0xff] %v1706
          %1723 = vst [vmem:[#allocation2 + $0x20] sm:$0xff] %v1707
          %1724 = vst [vmem:[#allocation2 + $0x28] sm:$0xff] %v1708
          %1725 = vst [vmem:[#allocation2 + $0x30] sm:$0xff] %v1709
          %1726 = vst [vmem:[#allocation2 + $0x38] sm:$0xff] %v1710
          %1727 = vst [vmem:[#allocation2 + $0x40] sm:$0xff] %v1711
          %1728 = vst [vmem:[#allocation2 + $0x48] sm:$0xff] %v1712
          %1729 = vst [vmem:[#allocation2 + $0x50] sm:$0xff] %v1713
          %1730 = vst [vmem:[#allocation2 + $0x58] sm:$0xff] %v1714
          %1731 = vst [vmem:[#allocation2 + $0x60] sm:$0xff] %v1715
          %1732 = vst [vmem:[#allocation2 + $0x68] sm:$0xff] %v1716
          %1733 = vst [vmem:[#allocation2 + $0x70] sm:$0xff] %v1717
          %1734 = vst [vmem:[#allocation2 + $0x78] sm:$0xff] %v1718
        $region96: #{tpu_custom_call.1} parent=55 // pred_fallthru
          _
        %p1735 = scmp.eq.s32.totalorder %s24, 1
        // Predicated region
        $region97: #{tpu_custom_call.1} parent=55 // pred_check
          %p1736 = pneg %p1735
        $region98: #{tpu_custom_call.1} parent=55 // pred_check_branch
          %1738 = sbr.rel (%p1736) target = $region100
        $region99: #{tpu_custom_call.1} parent=55 // pred_region
          %1739 = vst [vmem:[#allocation15] sm:$0xff] %v1621
          %1740 = vst [vmem:[#allocation15 + $0x8] sm:$0xff] %v1626
          %1741 = vst [vmem:[#allocation15 + $0x10] sm:$0xff] %v1631
          %1742 = vst [vmem:[#allocation15 + $0x18] sm:$0xff] %v1636
          %1743 = vst [vmem:[#allocation15 + $0x20] sm:$0xff] %v1641
          %1744 = vst [vmem:[#allocation15 + $0x28] sm:$0xff] %v1646
          %1745 = vst [vmem:[#allocation15 + $0x30] sm:$0xff] %v1651
          %1746 = vst [vmem:[#allocation15 + $0x38] sm:$0xff] %v1656
          %1747 = vst [vmem:[#allocation15 + $0x40] sm:$0xff] %v1661
          %1748 = vst [vmem:[#allocation15 + $0x48] sm:$0xff] %v1666
          %1749 = vst [vmem:[#allocation15 + $0x50] sm:$0xff] %v1671
          %1750 = vst [vmem:[#allocation15 + $0x58] sm:$0xff] %v1676
          %1751 = vst [vmem:[#allocation15 + $0x60] sm:$0xff] %v1681
          %1752 = vst [vmem:[#allocation15 + $0x68] sm:$0xff] %v1686
          %1753 = vst [vmem:[#allocation15 + $0x70] sm:$0xff] %v1691
          %1754 = vst [vmem:[#allocation15 + $0x78] sm:$0xff] %v1696
        $region100: #{tpu_custom_call.1} parent=55 // pred_fallthru
          _
        // Predicated region
        $region101: #{tpu_custom_call.1} parent=55 // pred_check
          %p1755 = pneg %p251
        $region102: #{tpu_custom_call.1} parent=55 // pred_check_branch
          %1757 = sbr.rel (%p1755) target = $region104
        $region103: #{tpu_custom_call.1} parent=55 // pred_region
          %s1759 = ssub.s32 2048, 2048
          %1760 = vsyncadd [#allocation5], %s1759
          %s1761 = sshll.u32 [#allocation15], 4
          %s1762 = int_to_ptr.vmem [resolvable:$true] %s1761
          %1767 = dma.vmem_to_hbm [thread:$0]  %s1762, 2048, %s9, [#allocation5], 128, 128, 8
        $region104: #{tpu_custom_call.1} parent=55 // pred_fallthru
          _
        // Predicated region
        $region105: #{tpu_custom_call.1} parent=55 // pred_check
          %p1768 = pneg %p251
        $region106: #{tpu_custom_call.1} parent=55 // pred_check_branch
          %1770 = sbr.rel (%p1768) target = $region108
        $region107: #{tpu_custom_call.1} parent=55 // pred_region
          %1771 = dma.done [#allocation5], 2048
        $region108: #{tpu_custom_call.1} parent=55 // pred_fallthru
          _
      $region56: #{tpu_custom_call.1} parent=5 // pred_fallthru
        _
      %p1772 = scmp.le.s32.totalorder 2, %s19
      // Predicated region
      $region109: #{tpu_custom_call.1} parent=5 // pred_check
        %p1773 = pneg %p1772
      $region110: #{tpu_custom_call.1} parent=5 // pred_check_branch
        %1775 = sbr.rel (%p1773) target = $region112
      $region111: #{tpu_custom_call.1} parent=5 // pred_region
        %s1776 = ssub.s32 %s19, 2
      $region112: #{tpu_custom_call.1} parent=5 // pred_fallthru
        _
    $region6: #{tpu_custom_call.1} parent=1 // loop_footer
      %s23 = sadd.s32 1, %s19
    $region7: #{tpu_custom_call.1} parent=1 // loop_footer_branch
      %18 = sbr.rel target = $region3
    $region8: #{tpu_custom_call.1} parent=1 // loop_exit
      _
    %1777 = vsyncpa [#allocation4], 1
    %s1778 = scalar_lea.sflag [#allocation4], 1
    %1779 = vsyncpa %s1778, 1
    %1780 = vsyncpa [#allocation7], 1
    %1781 = vsyncpa [#allocation10], 1
    %1782 = vsyncpa [#allocation5], 1
    %s1783 = scalar_lea.sflag [#allocation5], 1
    %1784 = vsyncpa %s1783, 1

</llo_original>
